<compile_context>
chip_gen: v7x
topology: tpu7x:2x2x1
jax: 0.10.0
libtpu: 0.0.40
codegen_flags: <defaults>
</compile_context>

<pallas_src>
import math

import jax
import jax.numpy as jnp
from jax import lax
from jax.experimental import pallas as pl
from jax.experimental.pallas import tpu as pltpu

LANE = 128  # lane width used for the final-layer padding


# ----------------------------------------------------------------------------
# Pallas kernel: fused (folded) fc + MLP head + softmax
# ----------------------------------------------------------------------------
def head_kernel(feat_ref,          # (B, 512)    f32   pooled features
                wf_ref,            # (512, 512)  bf16  folded [resnet18.fc ; fc[0]]
                w2_ref,            # (512, 256)  bf16  fc[2]
                w3_ref,            # (256, 32)   bf16  fc[4] (real width, no padding)
                w4_ref,            # (32, 128)   bf16  fc[6] (2 real cols, lane-padded)
                bias_ref,          # (1, 1024)   f32   all biases, lane-aligned segments
                out_ref):          # (B, 128)    f32   (2 real cols)
    x = feat_ref[...]

    # folded [resnet18.fc ; fc[0]] (512 -> 512) + ReLU
    h = jnp.dot(x.astype(jnp.bfloat16), wf_ref[...],
                preferred_element_type=jnp.float32) + bias_ref[:, 0:512]
    h = jnp.maximum(h, 0.0)

    # fc[2] (512 -> 256) + ReLU
    h = jnp.dot(h.astype(jnp.bfloat16), w2_ref[...],
                preferred_element_type=jnp.float32) + bias_ref[:, 512:768]
    h = jnp.maximum(h, 0.0)

    # fc[4] (256 -> 32) + ReLU  (kept at its real 32-lane width)
    h = jnp.dot(h.astype(jnp.bfloat16), w3_ref[...],
                preferred_element_type=jnp.float32) + bias_ref[:, 768:800]
    h = jnp.maximum(h, 0.0)

    # fc[6] (32 -> 2, zero-padded to 128 output lanes so the store is lane-dense);
    # padded logit columns carry a -1e30 bias (f32) -> exp() == 0 below.
    logits = jnp.dot(h.astype(jnp.bfloat16), w4_ref[...],
                     preferred_element_type=jnp.float32) + bias_ref[:, 896:1024]

    # softmax over the (padded) class axis == softmax over the 2 real classes
    m = jnp.max(logits, axis=-1, keepdims=True)
    e = jnp.exp(logits - m)
    out_ref[...] = e / jnp.sum(e, axis=-1, keepdims=True)


def prepare_head_params(head_params):
    """One-time (outside the kernel) fold + pad + pack + bf16 cast of head weights."""
    (wbb, bbb), (w1, b1), (w2, b2), (w3, b3), (w4, b4) = head_params

    # Fold resnet18.fc (512->1000) with fc[0] (1000->512) in f32; no activation
    # sits between them in the reference module, so the fold is exact.
    wf = wbb @ w1                          # (512, 512)
    bf = bbb @ w1 + b1                     # (512,)

    # fc[6]: pad 32->2 to 32->128 so the final matmul / output store is lane-dense.
    w4p = jnp.zeros((32, LANE), jnp.float32).at[:, :2].set(w4)
    b4p = jnp.full((LANE,), -1e30, jnp.float32).at[:2].set(b4)

    # Pack all f32 biases into one (1, 1024) row; segment starts are multiples
    # of 128 lanes:  [0:512) bf | [512:768) b2 | [768:800) b3 | [896:1024) b4p.
    bias = jnp.zeros((1, 1024), jnp.float32)
    bias = bias.at[0, 0:512].set(bf)
    bias = bias.at[0, 512:768].set(b2)
    bias = bias.at[0, 768:800].set(b3)
    bias = bias.at[0, 896:1024].set(b4p)

    bf16 = lambda w: w.astype(jnp.bfloat16)
    return (bf16(wf), bf16(w2), bf16(w3), bf16(w4p), bias)


def run_head(feat, prepared_head):
    """feat: (B, 512) f32 pooled features; returns (B, 2) softmax probs."""
    B = feat.shape[0]
    args = (feat,) + tuple(prepared_head)
    vmem = lambda: pl.BlockSpec(memory_space=pltpu.MemorySpace.VMEM)
    # Single-shot, gridless call: ~0.8 MB of operands, every store lane-dense.
    probs_padded = pl.pallas_call(
        head_kernel,
        out_shape=jax.ShapeDtypeStruct((B, LANE), jnp.float32),
        in_specs=[vmem() for _ in args],
        out_specs=vmem(),
    )(*args)
    return probs_padded[:, :2]


# ----------------------------------------------------------------------------
# ResNet18 backbone (plain JAX, eval-mode batchnorm, deterministic synthetic init)
# ----------------------------------------------------------------------------
def conv2d(x, w, stride=1, padding=0):
    return lax.conv_general_dilated(
        x, w,
        window_strides=(stride, stride),
        padding=[(padding, padding), (padding, padding)],
        dimension_numbers=("NCHW", "OIHW", "NCHW"))


def batchnorm(x, bn, eps=1e-5):
    gamma, beta, mean, var = bn
    scale = gamma / jnp.sqrt(var + eps)
    return x * scale[None, :, None, None] + (beta - mean * scale)[None, :, None, None]


def maxpool3x3_s2(x):
    return lax.reduce_window(
        x, -jnp.inf, lax.max,
        window_dimensions=(1, 1, 3, 3),
        window_strides=(1, 1, 2, 2),
        padding=[(0, 0), (0, 0), (1, 1), (1, 1)])


def basic_block(x, p, stride):
    identity = x
    out = conv2d(x, p["conv1"], stride=stride, padding=1)
    out = batchnorm(out, p["bn1"])
    out = jax.nn.relu(out)
    out = conv2d(out, p["conv2"], stride=1, padding=1)
    out = batchnorm(out, p["bn2"])
    if "down_conv" in p:
        identity = batchnorm(conv2d(x, p["down_conv"], stride=stride, padding=0),
                             p["down_bn"])
    return jax.nn.relu(out + identity)


def backbone_features(x, bp):
    # stem
    out = conv2d(x, bp["conv1"], stride=2, padding=3)
    out = batchnorm(out, bp["bn1"])
    out = jax.nn.relu(out)
    out = maxpool3x3_s2(out)
    # 4 stages x 2 BasicBlocks
    for (blocks, strides) in bp["layers"]:
        for blk, s in zip(blocks, strides):
            out = basic_block(out, blk, s)
    return out  # (B, 512, H/32, W/32)


# ----------------------------------------------------------------------------
# Deterministic parameter initialization (shapes match resnet18 + the fc head)
# ----------------------------------------------------------------------------
def make_params(seed=0):
    keys = iter(jax.random.split(jax.random.PRNGKey(seed), 256))
    nk = lambda: next(keys)

    def init_conv(out_c, in_c, kh, kw):
        fan_in = in_c * kh * kw
        return (jax.random.normal(nk(), (out_c, in_c, kh, kw), jnp.float32)
                * jnp.sqrt(2.0 / fan_in))

    def init_bn(c):
        gamma = 1.0 + 0.1 * jax.random.normal(nk(), (c,), jnp.float32)
        beta = 0.1 * jax.random.normal(nk(), (c,), jnp.float32)
        mean = 0.1 * jax.random.normal(nk(), (c,), jnp.float32)
        var = jnp.ones((c,), jnp.float32)
        return (gamma, beta, mean, var)

    def init_linear(in_f, out_f):
        bound = 1.0 / math.sqrt(in_f)
        w = jax.random.uniform(nk(), (in_f, out_f), jnp.float32, -bound, bound)
        b = jax.random.uniform(nk(), (out_f,), jnp.float32, -bound, bound)
        return (w, b)

    def make_block(in_c, out_c, stride):
        p = {
            "conv1": init_conv(out_c, in_c, 3, 3),
            "bn1": init_bn(out_c),
            "conv2": init_conv(out_c, out_c, 3, 3),
            "bn2": init_bn(out_c),
        }
        if stride != 1 or in_c != out_c:
            p["down_conv"] = init_conv(out_c, in_c, 1, 1)
            p["down_bn"] = init_bn(out_c)
        return p

    def make_layer(in_c, out_c, stride):
        return ([make_block(in_c, out_c, stride), make_block(out_c, out_c, 1)],
                [stride, 1])

    backbone = {
        "conv1": init_conv(64, 3, 7, 7),
        "bn1": init_bn(64),
        "layers": [
            make_layer(64, 64, 1),
            make_layer(64, 128, 2),
            make_layer(128, 256, 2),
            make_layer(256, 512, 2),
        ],
    }

    head = (
        init_linear(512, 1000),   # resnet18.fc
        init_linear(1000, 512),   # fc[0]
        init_linear(512, 256),    # fc[2]
        init_linear(256, 32),     # fc[4]
        init_linear(32, 2),       # fc[6]
    )
    return backbone, head


# ----------------------------------------------------------------------------
# Full NetClassify forward
# ----------------------------------------------------------------------------
def net_classify_forward(x, backbone_params, prepared_head):
    feat4 = backbone_features(x, backbone_params)      # (B, 512, h, w)
    feat = jnp.mean(feat4, axis=(2, 3))                # adaptive avg pool in XLA -> (B, 512)
    return run_head(feat.astype(jnp.float32), prepared_head)


if __name__ == "__main__":
    backbone_params, head_params = make_params(seed=0)
    # Fold / pad / pack / bf16-cast the head weights once, outside the kernel.
    prepared_head = jax.tree_util.tree_map(
        jax.block_until_ready, prepare_head_params(head_params))

    # small input consistent with the module (NCHW RGB image batch)
    x = jax.random.normal(jax.random.PRNGKey(0), (2, 3, 64, 64), jnp.float32)

    probs = net_classify_forward(x, backbone_params, prepared_head)
    probs = jax.block_until_ready(probs)

    assert probs.shape == (2, 2)
    assert bool(jnp.all(jnp.isfinite(probs)))
    assert bool(jnp.allclose(jnp.sum(probs, axis=1), 1.0, atol=1e-5))
    print("KERNEL_OK")
</pallas_src>

<mosaic_0001>
module attributes {stable_mosaic.version = 11 : i64} {
  func.func @head_kernel(%arg0: memref<2x512xf32, #tpu.memory_space<vmem>>, %arg1: memref<512x512xbf16, #tpu.memory_space<vmem>>, %arg2: memref<512x256xbf16, #tpu.memory_space<vmem>>, %arg3: memref<256x32xbf16, #tpu.memory_space<vmem>>, %arg4: memref<32x128xbf16, #tpu.memory_space<vmem>>, %arg5: memref<1x1024xf32, #tpu.memory_space<vmem>>, %arg6: memref<2x128xf32, #tpu.memory_space<vmem>>) attributes {dimension_semantics = [], scalar_prefetch = 0 : i64, scratch_operands = 0 : i64, tpu.core_type = #tpu.core_type<tc>} {
    %c0 = arith.constant 0 : index
    %c0_0 = arith.constant 0 : index
    %0 = vector.load %arg0[%c0, %c0_0] : memref<2x512xf32, #tpu.memory_space<vmem>>, vector<2x512xf32>
    %1 = arith.truncf %0 : vector<2x512xf32> to vector<2x512xbf16>
    %c0_1 = arith.constant 0 : index
    %c0_2 = arith.constant 0 : index
    %2 = vector.load %arg1[%c0_1, %c0_2] : memref<512x512xbf16, #tpu.memory_space<vmem>>, vector<512x512xbf16>
    %cst = arith.constant dense<0.000000e+00> : vector<2x512xf32>
    %3 = tpu.matmul %1, %2, %cst {dimension_numbers = #tpu.dot_dimension_numbers<[1], [0], [0], [1], [0, 0, 1, 1], [], []>} : vector<2x512xbf16>, vector<512x512xbf16>, vector<2x512xf32> -> vector<2x512xf32>
    %c0_3 = arith.constant 0 : index
    %c0_4 = arith.constant 0 : index
    %4 = vector.load %arg5[%c0_3, %c0_4] : memref<1x1024xf32, #tpu.memory_space<vmem>>, vector<1x512xf32>
    %5 = vector.broadcast %4 : vector<1x512xf32> to vector<2x512xf32>
    %6 = arith.addf %3, %5 : vector<2x512xf32>
    %cst_5 = arith.constant 0.000000e+00 : f32
    %7 = vector.broadcast %cst_5 : f32 to vector<2x512xf32>
    %8 = arith.maximumf %6, %7 : vector<2x512xf32>
    %9 = arith.truncf %8 : vector<2x512xf32> to vector<2x512xbf16>
    %c0_6 = arith.constant 0 : index
    %c0_7 = arith.constant 0 : index
    %10 = vector.load %arg2[%c0_6, %c0_7] : memref<512x256xbf16, #tpu.memory_space<vmem>>, vector<512x256xbf16>
    %cst_8 = arith.constant dense<0.000000e+00> : vector<2x256xf32>
    %11 = tpu.matmul %9, %10, %cst_8 {dimension_numbers = #tpu.dot_dimension_numbers<[1], [0], [0], [1], [0, 0, 1, 1], [], []>} : vector<2x512xbf16>, vector<512x256xbf16>, vector<2x256xf32> -> vector<2x256xf32>
    %c0_9 = arith.constant 0 : index
    %c512 = arith.constant 512 : index
    %12 = vector.load %arg5[%c0_9, %c512] : memref<1x1024xf32, #tpu.memory_space<vmem>>, vector<1x256xf32>
    %13 = vector.broadcast %12 : vector<1x256xf32> to vector<2x256xf32>
    %14 = arith.addf %11, %13 : vector<2x256xf32>
    %cst_10 = arith.constant 0.000000e+00 : f32
    %15 = vector.broadcast %cst_10 : f32 to vector<2x256xf32>
    %16 = arith.maximumf %14, %15 : vector<2x256xf32>
    %17 = arith.truncf %16 : vector<2x256xf32> to vector<2x256xbf16>
    %c0_11 = arith.constant 0 : index
    %c0_12 = arith.constant 0 : index
    %18 = vector.load %arg3[%c0_11, %c0_12] : memref<256x32xbf16, #tpu.memory_space<vmem>>, vector<256x32xbf16>
    %cst_13 = arith.constant dense<0.000000e+00> : vector<2x32xf32>
    %19 = tpu.matmul %17, %18, %cst_13 {dimension_numbers = #tpu.dot_dimension_numbers<[1], [0], [0], [1], [0, 0, 1, 1], [], []>} : vector<2x256xbf16>, vector<256x32xbf16>, vector<2x32xf32> -> vector<2x32xf32>
    %c0_14 = arith.constant 0 : index
    %c768 = arith.constant 768 : index
    %20 = vector.load %arg5[%c0_14, %c768] : memref<1x1024xf32, #tpu.memory_space<vmem>>, vector<1x32xf32>
    %21 = vector.broadcast %20 : vector<1x32xf32> to vector<2x32xf32>
    %22 = arith.addf %19, %21 : vector<2x32xf32>
    %cst_15 = arith.constant 0.000000e+00 : f32
    %23 = vector.broadcast %cst_15 : f32 to vector<2x32xf32>
    %24 = arith.maximumf %22, %23 : vector<2x32xf32>
    %25 = arith.truncf %24 : vector<2x32xf32> to vector<2x32xbf16>
    %c0_16 = arith.constant 0 : index
    %c0_17 = arith.constant 0 : index
    %26 = vector.load %arg4[%c0_16, %c0_17] : memref<32x128xbf16, #tpu.memory_space<vmem>>, vector<32x128xbf16>
    %cst_18 = arith.constant dense<0.000000e+00> : vector<2x128xf32>
    %27 = tpu.matmul %25, %26, %cst_18 {dimension_numbers = #tpu.dot_dimension_numbers<[1], [0], [0], [1], [0, 0, 1, 1], [], []>} : vector<2x32xbf16>, vector<32x128xbf16>, vector<2x128xf32> -> vector<2x128xf32>
    %c0_19 = arith.constant 0 : index
    %c896 = arith.constant 896 : index
    %28 = vector.load %arg5[%c0_19, %c896] : memref<1x1024xf32, #tpu.memory_space<vmem>>, vector<1x128xf32>
    %29 = vector.broadcast %28 : vector<1x128xf32> to vector<2x128xf32>
    %30 = arith.addf %27, %29 : vector<2x128xf32>
    %cst_20 = arith.constant dense<0xFF800000> : vector<2xf32>
    %31 = vector.multi_reduction <maximumf>, %30, %cst_20 [1] : vector<2x128xf32> to vector<2xf32>
    %32 = vector.shape_cast %31 : vector<2xf32> to vector<2x1xf32>
    %33 = vector.broadcast %32 : vector<2x1xf32> to vector<2x128xf32>
    %34 = arith.subf %30, %33 : vector<2x128xf32>
    %35 = math.exp %34 : vector<2x128xf32>
    %cst_21 = arith.constant dense<0.000000e+00> : vector<2xf32>
    %36 = vector.multi_reduction <add>, %35, %cst_21 [1] : vector<2x128xf32> to vector<2xf32>
    %37 = vector.shape_cast %36 : vector<2xf32> to vector<2x1xf32>
    %38 = vector.broadcast %37 : vector<2x1xf32> to vector<2x128xf32>
    %39 = arith.divf %35, %38 : vector<2x128xf32>
    %c0_22 = arith.constant 0 : index
    %c0_23 = arith.constant 0 : index
    %40 = vector.load %arg6[%c0_22, %c0_23] : memref<2x128xf32, #tpu.memory_space<vmem>>, vector<2x128xf32>
    tpu.vector_store %arg6[%c0_22, %c0_23], %39 {strides = array<i32>} : memref<2x128xf32, #tpu.memory_space<vmem>>, vector<2x128xf32>,
    return
  }
}

</mosaic_0001>

<llo_original>
// kernel: tpu_custom_call.1
$region0: #{tpu_custom_call.1}
  #allocation0 [shape = 'u32[]', space=smem, size = 0x4, offset = 0x4, fixed_abs, tag = 'smem constant byte address 0x4 - core index']
  #allocation1 [shape = 'u32[144,128]{1,0:T(1,128)}', space=vmem, size = 0x12000, scoped, tag = 'internal scratch']
  %s0 = inlined_call_operand.vmem [shape: f32[2,512], index: 0, kind: input, shape index: {}]
  %s1 = inlined_call_operand.hbm [shape: bf16[512,512], index: 1, kind: input, shape index: {}]
  %s2 = inlined_call_operand.hbm [shape: bf16[512,256], index: 2, kind: input, shape index: {}]
  %s3 = inlined_call_operand.vmem [shape: bf16[256,32], index: 3, kind: input, shape index: {}]
  %s4 = inlined_call_operand.vmem [shape: bf16[32,128], index: 4, kind: input, shape index: {}]
  %s5 = inlined_call_operand.vmem [shape: f32[1,1024], index: 5, kind: input, shape index: {}]
  %s6 = inlined_call_operand.hbm [shape: f32[2,128], index: 6, kind: output, shape index: {}]
  %s7 = sld [smem:[#allocation0]]
  $region42: #{tpu_custom_call.1} parent=0
    _
  %s9 = ssub.s32 1, %s7
  %s10 = scalar_select 0, %s9, %s7
  $region1: #{tpu_custom_call.1} parent=0
    #allocation2 [shape = 'u8[524288]{0}', space=vmem, size = 0x80000, scoped, tag = 'input window, operand 1, single buffered']
    #allocation3 [shape = 's32[1]{0}', space=sflag, size = 0x4, scoped, tag = 'scoped memory for tpu_custom_call.1']
    #allocation4 [shape = 's32[1]{0}', space=sflag, size = 0x4, scoped, tag = 'scoped memory for tpu_custom_call.1']
    #allocation5 [shape = 'u8[262144]{0}', space=vmem, size = 0x40000, scoped, tag = 'input window, operand 2, single buffered']
    #allocation6 [shape = 's32[1]{0}', space=sflag, size = 0x4, scoped, tag = 'scoped memory for tpu_custom_call.1']
    #allocation7 [shape = 'u8[1024]{0}', space=vmem, size = 0x400, scoped, tag = 'output window, operand 0, single buffered']
    %11 = vsyncpa [#allocation3], 0
    %12 = vsyncpa [#allocation6], 0
    %13 = vsyncpa [#allocation4], 0
    // Predicated region
    $region2: #{tpu_custom_call.1} parent=1 // pred_check
      _
    $region3: #{tpu_custom_call.1} parent=1 // pred_check_branch
      %15 = sbr.rel (0) target = $region5
    $region4: #{tpu_custom_call.1} parent=1 // pred_region
      _
    $region5: #{tpu_custom_call.1} parent=1 // pred_fallthru
      _
    // Predicated region
    $region6: #{tpu_custom_call.1} parent=1 // pred_check
      _
    $region7: #{tpu_custom_call.1} parent=1 // pred_check_branch
      %17 = sbr.rel (0) target = $region9
    $region8: #{tpu_custom_call.1} parent=1 // pred_region
      %s19 = ssub.s32 16384, 16384
      %20 = vsyncadd [#allocation3], %s19
      %s21 = sshll.u32 [#allocation2], 4
      %s22 = int_to_ptr.vmem [resolvable:$true] %s21
      %27 = dma.hbm_to_vmem [thread:$0]  %s1, 16384, %s22, [#allocation3], 256, 256, 16
    $region9: #{tpu_custom_call.1} parent=1 // pred_fallthru
      _
    // Predicated region
    $region10: #{tpu_custom_call.1} parent=1 // pred_check
      _
    $region11: #{tpu_custom_call.1} parent=1 // pred_check_branch
      %29 = sbr.rel (0) target = $region13
    $region12: #{tpu_custom_call.1} parent=1 // pred_region
      %s31 = ssub.s32 8192, 8192
      %32 = vsyncadd [#allocation6], %s31
      %s33 = sshll.u32 [#allocation5], 4
      %s34 = int_to_ptr.vmem [resolvable:$true] %s33
      %39 = dma.hbm_to_vmem [thread:$0]  %s2, 8192, %s34, [#allocation6], 128, 128, 8
    $region13: #{tpu_custom_call.1} parent=1 // pred_fallthru
      _
    // Predicated region
    $region14: #{tpu_custom_call.1} parent=1 // pred_check
      _
    $region15: #{tpu_custom_call.1} parent=1 // pred_check_branch
      %41 = sbr.rel (0) target = $region17
    $region16: #{tpu_custom_call.1} parent=1 // pred_region
      _
    $region17: #{tpu_custom_call.1} parent=1 // pred_fallthru
      _
    // Predicated region
    $region18: #{tpu_custom_call.1} parent=1 // pred_check
      _
    $region19: #{tpu_custom_call.1} parent=1 // pred_check_branch
      %43 = sbr.rel (0) target = $region21
    $region20: #{tpu_custom_call.1} parent=1 // pred_region
      _
    $region21: #{tpu_custom_call.1} parent=1 // pred_fallthru
      _
    // Predicated region
    $region22: #{tpu_custom_call.1} parent=1 // pred_check
      _
    $region23: #{tpu_custom_call.1} parent=1 // pred_check_branch
      %45 = sbr.rel (0) target = $region25
    $region24: #{tpu_custom_call.1} parent=1 // pred_region
      _
    $region25: #{tpu_custom_call.1} parent=1 // pred_fallthru
      _
    // Predicated region
    $region26: #{tpu_custom_call.1} parent=1 // pred_check
      _
    $region27: #{tpu_custom_call.1} parent=1 // pred_check_branch
      %47 = sbr.rel (0) target = $region29
    $region28: #{tpu_custom_call.1} parent=1 // pred_region
      %48 = dma.done [#allocation3], 16384
    $region29: #{tpu_custom_call.1} parent=1 // pred_fallthru
      _
    // Predicated region
    $region30: #{tpu_custom_call.1} parent=1 // pred_check
      _
    $region31: #{tpu_custom_call.1} parent=1 // pred_check_branch
      %50 = sbr.rel (0) target = $region33
    $region32: #{tpu_custom_call.1} parent=1 // pred_region
      %51 = dma.done [#allocation6], 8192
    $region33: #{tpu_custom_call.1} parent=1 // pred_fallthru
      _
    %v53 = vld [vmem:[%s0] sm:$0xff]
    %v55 = vcombine.high %v53, %v53
    %v57 = vunpack.c.l.s4 1983009808
    %v58 = vunpack.c.0.s8 %v57
    %v59 = vlaneseq
    %v60 = vshrl.u32 %v59, 7
    %v61 = vsub.s32 %v58, %v60
    %v62 = vrot.slane %v53, %v61
    %v64 = vunpack.c.l.s4 1983009808
    %v65 = vunpack.c.0.s8 %v64
    %v66 = vlaneseq
    %v67 = vshrl.u32 %v66, 7
    %v68 = vsub.s32 %v65, %v67
    %v69 = vrot.slane %v55, %v68
    %v70 = vcombine.high %v62, %v62
    %v71 = vcombine.high %v69, %v69
    %v76 = vpack.c.bf16 %v62, %v62
    %v77 = vpack.c.bf16 %v70, %v70
    %v78 = vpack.c.bf16 %v69, %v69
    %v79 = vpack.c.bf16 %v71, %v71
    %v80 = vld [vmem:[#allocation2] sm:$0xff]
    %v81 = vld [vmem:[#allocation2 + $0x8] sm:$0xff]
    %v82 = vld [vmem:[#allocation2 + $0x10] sm:$0xff]
    %v83 = vld [vmem:[#allocation2 + $0x18] sm:$0xff]
    %v84 = vld [vmem:[#allocation2 + $0x20] sm:$0xff]
    %v85 = vld [vmem:[#allocation2 + $0x28] sm:$0xff]
    %v86 = vld [vmem:[#allocation2 + $0x30] sm:$0xff]
    %v87 = vld [vmem:[#allocation2 + $0x38] sm:$0xff]
    %v88 = vld [vmem:[#allocation2 + $0x40] sm:$0xff]
    %v89 = vld [vmem:[#allocation2 + $0x48] sm:$0xff]
    %v90 = vld [vmem:[#allocation2 + $0x50] sm:$0xff]
    %v91 = vld [vmem:[#allocation2 + $0x58] sm:$0xff]
    %v92 = vld [vmem:[#allocation2 + $0x60] sm:$0xff]
    %v93 = vld [vmem:[#allocation2 + $0x68] sm:$0xff]
    %v94 = vld [vmem:[#allocation2 + $0x70] sm:$0xff]
    %v95 = vld [vmem:[#allocation2 + $0x78] sm:$0xff]
    %v96 = vld [vmem:[#allocation2 + $0x80] sm:$0xff]
    %v97 = vld [vmem:[#allocation2 + $0x88] sm:$0xff]
    %v98 = vld [vmem:[#allocation2 + $0x90] sm:$0xff]
    %v99 = vld [vmem:[#allocation2 + $0x98] sm:$0xff]
    %v100 = vld [vmem:[#allocation2 + $0xa0] sm:$0xff]
    %v101 = vld [vmem:[#allocation2 + $0xa8] sm:$0xff]
    %v102 = vld [vmem:[#allocation2 + $0xb0] sm:$0xff]
    %v103 = vld [vmem:[#allocation2 + $0xb8] sm:$0xff]
    %v104 = vld [vmem:[#allocation2 + $0xc0] sm:$0xff]
    %v105 = vld [vmem:[#allocation2 + $0xc8] sm:$0xff]
    %v106 = vld [vmem:[#allocation2 + $0xd0] sm:$0xff]
    %v107 = vld [vmem:[#allocation2 + $0xd8] sm:$0xff]
    %v108 = vld [vmem:[#allocation2 + $0xe0] sm:$0xff]
    %v109 = vld [vmem:[#allocation2 + $0xe8] sm:$0xff]
    %v110 = vld [vmem:[#allocation2 + $0xf0] sm:$0xff]
    %v111 = vld [vmem:[#allocation2 + $0xf8] sm:$0xff]
    %v112 = vld [vmem:[#allocation2 + $0x100] sm:$0xff]
    %v113 = vld [vmem:[#allocation2 + $0x108] sm:$0xff]
    %v114 = vld [vmem:[#allocation2 + $0x110] sm:$0xff]
    %v115 = vld [vmem:[#allocation2 + $0x118] sm:$0xff]
    %v116 = vld [vmem:[#allocation2 + $0x120] sm:$0xff]
    %v117 = vld [vmem:[#allocation2 + $0x128] sm:$0xff]
    %v118 = vld [vmem:[#allocation2 + $0x130] sm:$0xff]
    %v119 = vld [vmem:[#allocation2 + $0x138] sm:$0xff]
    %v120 = vld [vmem:[#allocation2 + $0x140] sm:$0xff]
    %v121 = vld [vmem:[#allocation2 + $0x148] sm:$0xff]
    %v122 = vld [vmem:[#allocation2 + $0x150] sm:$0xff]
    %v123 = vld [vmem:[#allocation2 + $0x158] sm:$0xff]
    %v124 = vld [vmem:[#allocation2 + $0x160] sm:$0xff]
    %v125 = vld [vmem:[#allocation2 + $0x168] sm:$0xff]
    %v126 = vld [vmem:[#allocation2 + $0x170] sm:$0xff]
    %v127 = vld [vmem:[#allocation2 + $0x178] sm:$0xff]
    %v128 = vld [vmem:[#allocation2 + $0x180] sm:$0xff]
    %v129 = vld [vmem:[#allocation2 + $0x188] sm:$0xff]
    %v130 = vld [vmem:[#allocation2 + $0x190] sm:$0xff]
    %v131 = vld [vmem:[#allocation2 + $0x198] sm:$0xff]
    %v132 = vld [vmem:[#allocation2 + $0x1a0] sm:$0xff]
    %v133 = vld [vmem:[#allocation2 + $0x1a8] sm:$0xff]
    %v134 = vld [vmem:[#allocation2 + $0x1b0] sm:$0xff]
    %v135 = vld [vmem:[#allocation2 + $0x1b8] sm:$0xff]
    %v136 = vld [vmem:[#allocation2 + $0x1c0] sm:$0xff]
    %v137 = vld [vmem:[#allocation2 + $0x1c8] sm:$0xff]
    %v138 = vld [vmem:[#allocation2 + $0x1d0] sm:$0xff]
    %v139 = vld [vmem:[#allocation2 + $0x1d8] sm:$0xff]
    %v140 = vld [vmem:[#allocation2 + $0x1e0] sm:$0xff]
    %v141 = vld [vmem:[#allocation2 + $0x1e8] sm:$0xff]
    %v142 = vld [vmem:[#allocation2 + $0x1f0] sm:$0xff]
    %v143 = vld [vmem:[#allocation2 + $0x1f8] sm:$0xff]
    %v144 = vld [vmem:[#allocation2 + $0x200] sm:$0xff]
    %v145 = vld [vmem:[#allocation2 + $0x208] sm:$0xff]
    %v146 = vld [vmem:[#allocation2 + $0x210] sm:$0xff]
    %v147 = vld [vmem:[#allocation2 + $0x218] sm:$0xff]
    %v148 = vld [vmem:[#allocation2 + $0x220] sm:$0xff]
    %v149 = vld [vmem:[#allocation2 + $0x228] sm:$0xff]
    %v150 = vld [vmem:[#allocation2 + $0x230] sm:$0xff]
    %v151 = vld [vmem:[#allocation2 + $0x238] sm:$0xff]
    %v152 = vld [vmem:[#allocation2 + $0x240] sm:$0xff]
    %v153 = vld [vmem:[#allocation2 + $0x248] sm:$0xff]
    %v154 = vld [vmem:[#allocation2 + $0x250] sm:$0xff]
    %v155 = vld [vmem:[#allocation2 + $0x258] sm:$0xff]
    %v156 = vld [vmem:[#allocation2 + $0x260] sm:$0xff]
    %v157 = vld [vmem:[#allocation2 + $0x268] sm:$0xff]
    %v158 = vld [vmem:[#allocation2 + $0x270] sm:$0xff]
    %v159 = vld [vmem:[#allocation2 + $0x278] sm:$0xff]
    %v160 = vld [vmem:[#allocation2 + $0x280] sm:$0xff]
    %v161 = vld [vmem:[#allocation2 + $0x288] sm:$0xff]
    %v162 = vld [vmem:[#allocation2 + $0x290] sm:$0xff]
    %v163 = vld [vmem:[#allocation2 + $0x298] sm:$0xff]
    %v164 = vld [vmem:[#allocation2 + $0x2a0] sm:$0xff]
    %v165 = vld [vmem:[#allocation2 + $0x2a8] sm:$0xff]
    %v166 = vld [vmem:[#allocation2 + $0x2b0] sm:$0xff]
    %v167 = vld [vmem:[#allocation2 + $0x2b8] sm:$0xff]
    %v168 = vld [vmem:[#allocation2 + $0x2c0] sm:$0xff]
    %v169 = vld [vmem:[#allocation2 + $0x2c8] sm:$0xff]
    %v170 = vld [vmem:[#allocation2 + $0x2d0] sm:$0xff]
    %v171 = vld [vmem:[#allocation2 + $0x2d8] sm:$0xff]
    %v172 = vld [vmem:[#allocation2 + $0x2e0] sm:$0xff]
    %v173 = vld [vmem:[#allocation2 + $0x2e8] sm:$0xff]
    %v174 = vld [vmem:[#allocation2 + $0x2f0] sm:$0xff]
    %v175 = vld [vmem:[#allocation2 + $0x2f8] sm:$0xff]
    %v176 = vld [vmem:[#allocation2 + $0x300] sm:$0xff]
    %v177 = vld [vmem:[#allocation2 + $0x308] sm:$0xff]
    %v178 = vld [vmem:[#allocation2 + $0x310] sm:$0xff]
    %v179 = vld [vmem:[#allocation2 + $0x318] sm:$0xff]
    %v180 = vld [vmem:[#allocation2 + $0x320] sm:$0xff]
    %v181 = vld [vmem:[#allocation2 + $0x328] sm:$0xff]
    %v182 = vld [vmem:[#allocation2 + $0x330] sm:$0xff]
    %v183 = vld [vmem:[#allocation2 + $0x338] sm:$0xff]
    %v184 = vld [vmem:[#allocation2 + $0x340] sm:$0xff]
    %v185 = vld [vmem:[#allocation2 + $0x348] sm:$0xff]
    %v186 = vld [vmem:[#allocation2 + $0x350] sm:$0xff]
    %v187 = vld [vmem:[#allocation2 + $0x358] sm:$0xff]
    %v188 = vld [vmem:[#allocation2 + $0x360] sm:$0xff]
    %v189 = vld [vmem:[#allocation2 + $0x368] sm:$0xff]
    %v190 = vld [vmem:[#allocation2 + $0x370] sm:$0xff]
    %v191 = vld [vmem:[#allocation2 + $0x378] sm:$0xff]
    %v192 = vld [vmem:[#allocation2 + $0x380] sm:$0xff]
    %v193 = vld [vmem:[#allocation2 + $0x388] sm:$0xff]
    %v194 = vld [vmem:[#allocation2 + $0x390] sm:$0xff]
    %v195 = vld [vmem:[#allocation2 + $0x398] sm:$0xff]
    %v196 = vld [vmem:[#allocation2 + $0x3a0] sm:$0xff]
    %v197 = vld [vmem:[#allocation2 + $0x3a8] sm:$0xff]
    %v198 = vld [vmem:[#allocation2 + $0x3b0] sm:$0xff]
    %v199 = vld [vmem:[#allocation2 + $0x3b8] sm:$0xff]
    %v200 = vld [vmem:[#allocation2 + $0x3c0] sm:$0xff]
    %v201 = vld [vmem:[#allocation2 + $0x3c8] sm:$0xff]
    %v202 = vld [vmem:[#allocation2 + $0x3d0] sm:$0xff]
    %v203 = vld [vmem:[#allocation2 + $0x3d8] sm:$0xff]
    %v204 = vld [vmem:[#allocation2 + $0x3e0] sm:$0xff]
    %v205 = vld [vmem:[#allocation2 + $0x3e8] sm:$0xff]
    %v206 = vld [vmem:[#allocation2 + $0x3f0] sm:$0xff]
    %v207 = vld [vmem:[#allocation2 + $0x3f8] sm:$0xff]
    %v208 = vld [vmem:[%s5] sm:$0xf]
    %v210 = vlaneseq
    %v211 = vshrl.u32 %v210, 7
    %v212 = vsub.s32 0, %v211
    %v213 = vrot.slane %v208, %v212
    %v214 = vlaneseq
    %v215 = vshrl.u32 %v214, 7
    %v216 = vsub.s32 1, %v215
    %v217 = vrot.slane %v208, %v216
    %v218 = vlaneseq
    %v219 = vshrl.u32 %v218, 7
    %v220 = vsub.s32 2, %v219
    %v221 = vrot.slane %v208, %v220
    %v222 = vlaneseq
    %v223 = vshrl.u32 %v222, 7
    %v224 = vsub.s32 3, %v223
    %v225 = vrot.slane %v208, %v224
    %v358 = vunpack.c.l.b16 %v80
    %v359 = vunpack.c.h.b16 %v80
    %v360 = vunpack.c.l.b16 %v81
    %v361 = vunpack.c.h.b16 %v81
    %v362 = vunpack.c.l.b16 %v82
    %v363 = vunpack.c.h.b16 %v82
    %v364 = vunpack.c.l.b16 %v83
    %v365 = vunpack.c.h.b16 %v83
    %v366 = vunpack.c.l.b16 %v84
    %v367 = vunpack.c.h.b16 %v84
    %v368 = vunpack.c.l.b16 %v85
    %v369 = vunpack.c.h.b16 %v85
    %v370 = vunpack.c.l.b16 %v86
    %v371 = vunpack.c.h.b16 %v86
    %v372 = vunpack.c.l.b16 %v87
    %v373 = vunpack.c.h.b16 %v87
    %v374 = vunpack.c.l.b16 %v88
    %v375 = vunpack.c.h.b16 %v88
    %v376 = vunpack.c.l.b16 %v89
    %v377 = vunpack.c.h.b16 %v89
    %v378 = vunpack.c.l.b16 %v90
    %v379 = vunpack.c.h.b16 %v90
    %v380 = vunpack.c.l.b16 %v91
    %v381 = vunpack.c.h.b16 %v91
    %v382 = vunpack.c.l.b16 %v92
    %v383 = vunpack.c.h.b16 %v92
    %v384 = vunpack.c.l.b16 %v93
    %v385 = vunpack.c.h.b16 %v93
    %v386 = vunpack.c.l.b16 %v94
    %v387 = vunpack.c.h.b16 %v94
    %v388 = vunpack.c.l.b16 %v95
    %v389 = vunpack.c.h.b16 %v95
    %v390 = vunpack.c.l.b16 %v96
    %v391 = vunpack.c.h.b16 %v96
    %v392 = vunpack.c.l.b16 %v97
    %v393 = vunpack.c.h.b16 %v97
    %v394 = vunpack.c.l.b16 %v98
    %v395 = vunpack.c.h.b16 %v98
    %v396 = vunpack.c.l.b16 %v99
    %v397 = vunpack.c.h.b16 %v99
    %v398 = vunpack.c.l.b16 %v100
    %v399 = vunpack.c.h.b16 %v100
    %v400 = vunpack.c.l.b16 %v101
    %v401 = vunpack.c.h.b16 %v101
    %v402 = vunpack.c.l.b16 %v102
    %v403 = vunpack.c.h.b16 %v102
    %v404 = vunpack.c.l.b16 %v103
    %v405 = vunpack.c.h.b16 %v103
    %v406 = vunpack.c.l.b16 %v104
    %v407 = vunpack.c.h.b16 %v104
    %v408 = vunpack.c.l.b16 %v105
    %v409 = vunpack.c.h.b16 %v105
    %v410 = vunpack.c.l.b16 %v106
    %v411 = vunpack.c.h.b16 %v106
    %v412 = vunpack.c.l.b16 %v107
    %v413 = vunpack.c.h.b16 %v107
    %v414 = vunpack.c.l.b16 %v108
    %v415 = vunpack.c.h.b16 %v108
    %v416 = vunpack.c.l.b16 %v109
    %v417 = vunpack.c.h.b16 %v109
    %v418 = vunpack.c.l.b16 %v110
    %v419 = vunpack.c.h.b16 %v110
    %v420 = vunpack.c.l.b16 %v111
    %v421 = vunpack.c.h.b16 %v111
    %v422 = vunpack.c.l.b16 %v112
    %v423 = vunpack.c.h.b16 %v112
    %v424 = vunpack.c.l.b16 %v113
    %v425 = vunpack.c.h.b16 %v113
    %v426 = vunpack.c.l.b16 %v114
    %v427 = vunpack.c.h.b16 %v114
    %v428 = vunpack.c.l.b16 %v115
    %v429 = vunpack.c.h.b16 %v115
    %v430 = vunpack.c.l.b16 %v116
    %v431 = vunpack.c.h.b16 %v116
    %v432 = vunpack.c.l.b16 %v117
    %v433 = vunpack.c.h.b16 %v117
    %v434 = vunpack.c.l.b16 %v118
    %v435 = vunpack.c.h.b16 %v118
    %v436 = vunpack.c.l.b16 %v119
    %v437 = vunpack.c.h.b16 %v119
    %v438 = vunpack.c.l.b16 %v120
    %v439 = vunpack.c.h.b16 %v120
    %v440 = vunpack.c.l.b16 %v121
    %v441 = vunpack.c.h.b16 %v121
    %v442 = vunpack.c.l.b16 %v122
    %v443 = vunpack.c.h.b16 %v122
    %v444 = vunpack.c.l.b16 %v123
    %v445 = vunpack.c.h.b16 %v123
    %v446 = vunpack.c.l.b16 %v124
    %v447 = vunpack.c.h.b16 %v124
    %v448 = vunpack.c.l.b16 %v125
    %v449 = vunpack.c.h.b16 %v125
    %v450 = vunpack.c.l.b16 %v126
    %v451 = vunpack.c.h.b16 %v126
    %v452 = vunpack.c.l.b16 %v127
    %v453 = vunpack.c.h.b16 %v127
    %v454 = vunpack.c.l.b16 %v128
    %v455 = vunpack.c.h.b16 %v128
    %v456 = vunpack.c.l.b16 %v129
    %v457 = vunpack.c.h.b16 %v129
    %v458 = vunpack.c.l.b16 %v130
    %v459 = vunpack.c.h.b16 %v130
    %v460 = vunpack.c.l.b16 %v131
    %v461 = vunpack.c.h.b16 %v131
    %v462 = vunpack.c.l.b16 %v132
    %v463 = vunpack.c.h.b16 %v132
    %v464 = vunpack.c.l.b16 %v133
    %v465 = vunpack.c.h.b16 %v133
    %v466 = vunpack.c.l.b16 %v134
    %v467 = vunpack.c.h.b16 %v134
    %v468 = vunpack.c.l.b16 %v135
    %v469 = vunpack.c.h.b16 %v135
    %v470 = vunpack.c.l.b16 %v136
    %v471 = vunpack.c.h.b16 %v136
    %v472 = vunpack.c.l.b16 %v137
    %v473 = vunpack.c.h.b16 %v137
    %v474 = vunpack.c.l.b16 %v138
    %v475 = vunpack.c.h.b16 %v138
    %v476 = vunpack.c.l.b16 %v139
    %v477 = vunpack.c.h.b16 %v139
    %v478 = vunpack.c.l.b16 %v140
    %v479 = vunpack.c.h.b16 %v140
    %v480 = vunpack.c.l.b16 %v141
    %v481 = vunpack.c.h.b16 %v141
    %v482 = vunpack.c.l.b16 %v142
    %v483 = vunpack.c.h.b16 %v142
    %v484 = vunpack.c.l.b16 %v143
    %v485 = vunpack.c.h.b16 %v143
    %v486 = vunpack.c.l.b16 %v144
    %v487 = vunpack.c.h.b16 %v144
    %v488 = vunpack.c.l.b16 %v145
    %v489 = vunpack.c.h.b16 %v145
    %v490 = vunpack.c.l.b16 %v146
    %v491 = vunpack.c.h.b16 %v146
    %v492 = vunpack.c.l.b16 %v147
    %v493 = vunpack.c.h.b16 %v147
    %v494 = vunpack.c.l.b16 %v148
    %v495 = vunpack.c.h.b16 %v148
    %v496 = vunpack.c.l.b16 %v149
    %v497 = vunpack.c.h.b16 %v149
    %v498 = vunpack.c.l.b16 %v150
    %v499 = vunpack.c.h.b16 %v150
    %v500 = vunpack.c.l.b16 %v151
    %v501 = vunpack.c.h.b16 %v151
    %v502 = vunpack.c.l.b16 %v152
    %v503 = vunpack.c.h.b16 %v152
    %v504 = vunpack.c.l.b16 %v153
    %v505 = vunpack.c.h.b16 %v153
    %v506 = vunpack.c.l.b16 %v154
    %v507 = vunpack.c.h.b16 %v154
    %v508 = vunpack.c.l.b16 %v155
    %v509 = vunpack.c.h.b16 %v155
    %v510 = vunpack.c.l.b16 %v156
    %v511 = vunpack.c.h.b16 %v156
    %v512 = vunpack.c.l.b16 %v157
    %v513 = vunpack.c.h.b16 %v157
    %v514 = vunpack.c.l.b16 %v158
    %v515 = vunpack.c.h.b16 %v158
    %v516 = vunpack.c.l.b16 %v159
    %v517 = vunpack.c.h.b16 %v159
    %v518 = vunpack.c.l.b16 %v160
    %v519 = vunpack.c.h.b16 %v160
    %v520 = vunpack.c.l.b16 %v161
    %v521 = vunpack.c.h.b16 %v161
    %v522 = vunpack.c.l.b16 %v162
    %v523 = vunpack.c.h.b16 %v162
    %v524 = vunpack.c.l.b16 %v163
    %v525 = vunpack.c.h.b16 %v163
    %v526 = vunpack.c.l.b16 %v164
    %v527 = vunpack.c.h.b16 %v164
    %v528 = vunpack.c.l.b16 %v165
    %v529 = vunpack.c.h.b16 %v165
    %v530 = vunpack.c.l.b16 %v166
    %v531 = vunpack.c.h.b16 %v166
    %v532 = vunpack.c.l.b16 %v167
    %v533 = vunpack.c.h.b16 %v167
    %v534 = vunpack.c.l.b16 %v168
    %v535 = vunpack.c.h.b16 %v168
    %v536 = vunpack.c.l.b16 %v169
    %v537 = vunpack.c.h.b16 %v169
    %v538 = vunpack.c.l.b16 %v170
    %v539 = vunpack.c.h.b16 %v170
    %v540 = vunpack.c.l.b16 %v171
    %v541 = vunpack.c.h.b16 %v171
    %v542 = vunpack.c.l.b16 %v172
    %v543 = vunpack.c.h.b16 %v172
    %v544 = vunpack.c.l.b16 %v173
    %v545 = vunpack.c.h.b16 %v173
    %v546 = vunpack.c.l.b16 %v174
    %v547 = vunpack.c.h.b16 %v174
    %v548 = vunpack.c.l.b16 %v175
    %v549 = vunpack.c.h.b16 %v175
    %v550 = vunpack.c.l.b16 %v176
    %v551 = vunpack.c.h.b16 %v176
    %v552 = vunpack.c.l.b16 %v177
    %v553 = vunpack.c.h.b16 %v177
    %v554 = vunpack.c.l.b16 %v178
    %v555 = vunpack.c.h.b16 %v178
    %v556 = vunpack.c.l.b16 %v179
    %v557 = vunpack.c.h.b16 %v179
    %v558 = vunpack.c.l.b16 %v180
    %v559 = vunpack.c.h.b16 %v180
    %v560 = vunpack.c.l.b16 %v181
    %v561 = vunpack.c.h.b16 %v181
    %v562 = vunpack.c.l.b16 %v182
    %v563 = vunpack.c.h.b16 %v182
    %v564 = vunpack.c.l.b16 %v183
    %v565 = vunpack.c.h.b16 %v183
    %v566 = vunpack.c.l.b16 %v184
    %v567 = vunpack.c.h.b16 %v184
    %v568 = vunpack.c.l.b16 %v185
    %v569 = vunpack.c.h.b16 %v185
    %v570 = vunpack.c.l.b16 %v186
    %v571 = vunpack.c.h.b16 %v186
    %v572 = vunpack.c.l.b16 %v187
    %v573 = vunpack.c.h.b16 %v187
    %v574 = vunpack.c.l.b16 %v188
    %v575 = vunpack.c.h.b16 %v188
    %v576 = vunpack.c.l.b16 %v189
    %v577 = vunpack.c.h.b16 %v189
    %v578 = vunpack.c.l.b16 %v190
    %v579 = vunpack.c.h.b16 %v190
    %v580 = vunpack.c.l.b16 %v191
    %v581 = vunpack.c.h.b16 %v191
    %v582 = vunpack.c.l.b16 %v192
    %v583 = vunpack.c.h.b16 %v192
    %v584 = vunpack.c.l.b16 %v193
    %v585 = vunpack.c.h.b16 %v193
    %v586 = vunpack.c.l.b16 %v194
    %v587 = vunpack.c.h.b16 %v194
    %v588 = vunpack.c.l.b16 %v195
    %v589 = vunpack.c.h.b16 %v195
    %v590 = vunpack.c.l.b16 %v196
    %v591 = vunpack.c.h.b16 %v196
    %v592 = vunpack.c.l.b16 %v197
    %v593 = vunpack.c.h.b16 %v197
    %v594 = vunpack.c.l.b16 %v198
    %v595 = vunpack.c.h.b16 %v198
    %v596 = vunpack.c.l.b16 %v199
    %v597 = vunpack.c.h.b16 %v199
    %v598 = vunpack.c.l.b16 %v200
    %v599 = vunpack.c.h.b16 %v200
    %v600 = vunpack.c.l.b16 %v201
    %v601 = vunpack.c.h.b16 %v201
    %v602 = vunpack.c.l.b16 %v202
    %v603 = vunpack.c.h.b16 %v202
    %v604 = vunpack.c.l.b16 %v203
    %v605 = vunpack.c.h.b16 %v203
    %v606 = vunpack.c.l.b16 %v204
    %v607 = vunpack.c.h.b16 %v204
    %v608 = vunpack.c.l.b16 %v205
    %v609 = vunpack.c.h.b16 %v205
    %v610 = vunpack.c.l.b16 %v206
    %v611 = vunpack.c.h.b16 %v206
    %v612 = vunpack.c.l.b16 %v207
    %v613 = vunpack.c.h.b16 %v207
    %v614 = vpack.c.b16 %v362, %v358
    %v615 = vpack.c.b16 %v363, %v359
    %v616 = vpack.c.b16 %v364, %v360
    %v617 = vpack.c.b16 %v365, %v361
    %v618 = vpack.c.b16 %v370, %v366
    %v619 = vpack.c.b16 %v371, %v367
    %v620 = vpack.c.b16 %v372, %v368
    %v621 = vpack.c.b16 %v373, %v369
    %v622 = vpack.c.b16 %v378, %v374
    %v623 = vpack.c.b16 %v379, %v375
    %v624 = vpack.c.b16 %v380, %v376
    %v625 = vpack.c.b16 %v381, %v377
    %v626 = vpack.c.b16 %v386, %v382
    %v627 = vpack.c.b16 %v387, %v383
    %v628 = vpack.c.b16 %v388, %v384
    %v629 = vpack.c.b16 %v389, %v385
    %v630 = vpack.c.b16 %v394, %v390
    %v631 = vpack.c.b16 %v395, %v391
    %v632 = vpack.c.b16 %v396, %v392
    %v633 = vpack.c.b16 %v397, %v393
    %v634 = vpack.c.b16 %v402, %v398
    %v635 = vpack.c.b16 %v403, %v399
    %v636 = vpack.c.b16 %v404, %v400
    %v637 = vpack.c.b16 %v405, %v401
    %v638 = vpack.c.b16 %v410, %v406
    %v639 = vpack.c.b16 %v411, %v407
    %v640 = vpack.c.b16 %v412, %v408
    %v641 = vpack.c.b16 %v413, %v409
    %v642 = vpack.c.b16 %v418, %v414
    %v643 = vpack.c.b16 %v419, %v415
    %v644 = vpack.c.b16 %v420, %v416
    %v645 = vpack.c.b16 %v421, %v417
    %v646 = vpack.c.b16 %v426, %v422
    %v647 = vpack.c.b16 %v427, %v423
    %v648 = vpack.c.b16 %v428, %v424
    %v649 = vpack.c.b16 %v429, %v425
    %v650 = vpack.c.b16 %v434, %v430
    %v651 = vpack.c.b16 %v435, %v431
    %v652 = vpack.c.b16 %v436, %v432
    %v653 = vpack.c.b16 %v437, %v433
    %v654 = vpack.c.b16 %v442, %v438
    %v655 = vpack.c.b16 %v443, %v439
    %v656 = vpack.c.b16 %v444, %v440
    %v657 = vpack.c.b16 %v445, %v441
    %v658 = vpack.c.b16 %v450, %v446
    %v659 = vpack.c.b16 %v451, %v447
    %v660 = vpack.c.b16 %v452, %v448
    %v661 = vpack.c.b16 %v453, %v449
    %v662 = vpack.c.b16 %v458, %v454
    %v663 = vpack.c.b16 %v459, %v455
    %v664 = vpack.c.b16 %v460, %v456
    %v665 = vpack.c.b16 %v461, %v457
    %v666 = vpack.c.b16 %v466, %v462
    %v667 = vpack.c.b16 %v467, %v463
    %v668 = vpack.c.b16 %v468, %v464
    %v669 = vpack.c.b16 %v469, %v465
    %v670 = vpack.c.b16 %v474, %v470
    %v671 = vpack.c.b16 %v475, %v471
    %v672 = vpack.c.b16 %v476, %v472
    %v673 = vpack.c.b16 %v477, %v473
    %v674 = vpack.c.b16 %v482, %v478
    %v675 = vpack.c.b16 %v483, %v479
    %v676 = vpack.c.b16 %v484, %v480
    %v677 = vpack.c.b16 %v485, %v481
    %v678 = vpack.c.b16 %v490, %v486
    %v679 = vpack.c.b16 %v491, %v487
    %v680 = vpack.c.b16 %v492, %v488
    %v681 = vpack.c.b16 %v493, %v489
    %v682 = vpack.c.b16 %v498, %v494
    %v683 = vpack.c.b16 %v499, %v495
    %v684 = vpack.c.b16 %v500, %v496
    %v685 = vpack.c.b16 %v501, %v497
    %v686 = vpack.c.b16 %v506, %v502
    %v687 = vpack.c.b16 %v507, %v503
    %v688 = vpack.c.b16 %v508, %v504
    %v689 = vpack.c.b16 %v509, %v505
    %v690 = vpack.c.b16 %v514, %v510
    %v691 = vpack.c.b16 %v515, %v511
    %v692 = vpack.c.b16 %v516, %v512
    %v693 = vpack.c.b16 %v517, %v513
    %v694 = vpack.c.b16 %v522, %v518
    %v695 = vpack.c.b16 %v523, %v519
    %v696 = vpack.c.b16 %v524, %v520
    %v697 = vpack.c.b16 %v525, %v521
    %v698 = vpack.c.b16 %v530, %v526
    %v699 = vpack.c.b16 %v531, %v527
    %v700 = vpack.c.b16 %v532, %v528
    %v701 = vpack.c.b16 %v533, %v529
    %v702 = vpack.c.b16 %v538, %v534
    %v703 = vpack.c.b16 %v539, %v535
    %v704 = vpack.c.b16 %v540, %v536
    %v705 = vpack.c.b16 %v541, %v537
    %v706 = vpack.c.b16 %v546, %v542
    %v707 = vpack.c.b16 %v547, %v543
    %v708 = vpack.c.b16 %v548, %v544
    %v709 = vpack.c.b16 %v549, %v545
    %v710 = vpack.c.b16 %v554, %v550
    %v711 = vpack.c.b16 %v555, %v551
    %v712 = vpack.c.b16 %v556, %v552
    %v713 = vpack.c.b16 %v557, %v553
    %v714 = vpack.c.b16 %v562, %v558
    %v715 = vpack.c.b16 %v563, %v559
    %v716 = vpack.c.b16 %v564, %v560
    %v717 = vpack.c.b16 %v565, %v561
    %v718 = vpack.c.b16 %v570, %v566
    %v719 = vpack.c.b16 %v571, %v567
    %v720 = vpack.c.b16 %v572, %v568
    %v721 = vpack.c.b16 %v573, %v569
    %v722 = vpack.c.b16 %v578, %v574
    %v723 = vpack.c.b16 %v579, %v575
    %v724 = vpack.c.b16 %v580, %v576
    %v725 = vpack.c.b16 %v581, %v577
    %v726 = vpack.c.b16 %v586, %v582
    %v727 = vpack.c.b16 %v587, %v583
    %v728 = vpack.c.b16 %v588, %v584
    %v729 = vpack.c.b16 %v589, %v585
    %v730 = vpack.c.b16 %v594, %v590
    %v731 = vpack.c.b16 %v595, %v591
    %v732 = vpack.c.b16 %v596, %v592
    %v733 = vpack.c.b16 %v597, %v593
    %v734 = vpack.c.b16 %v602, %v598
    %v735 = vpack.c.b16 %v603, %v599
    %v736 = vpack.c.b16 %v604, %v600
    %v737 = vpack.c.b16 %v605, %v601
    %v738 = vpack.c.b16 %v610, %v606
    %v739 = vpack.c.b16 %v611, %v607
    %v740 = vpack.c.b16 %v612, %v608
    %v741 = vpack.c.b16 %v613, %v609
    %870 = vmatprep.subr.bf16.mxu0 %v615
    %871 = vmatpush1.bf16.msra.mxu0 %v614
    %872 = vmatprep.subr.bf16.mxu0 %v619
    %873 = vmatpush1.bf16.msra.mxu0 %v618
    %874 = vmatprep.subr.bf16.mxu0 %v623
    %875 = vmatpush1.bf16.msra.mxu0 %v622
    %876 = vmatprep.subr.bf16.mxu0 %v627
    %877 = vmatpush1.bf16.msra.mxu0 %v626
    %878 = vmatprep.subr.bf16.mxu0 %v631
    %879 = vmatpush1.bf16.msra.mxu0 %v630
    %880 = vmatprep.subr.bf16.mxu0 %v635
    %881 = vmatpush1.bf16.msra.mxu0 %v634
    %882 = vmatprep.subr.bf16.mxu0 %v639
    %883 = vmatpush1.bf16.msra.mxu0 %v638
    %884 = vmatprep.subr.bf16.mxu0 %v643
    %885 = vmatpush1.bf16.msra.mxu0 %v642
    %886 = vmatprep.subr.bf16.mxu0 %v647
    %887 = vmatpush1.bf16.msra.mxu0 %v646
    %888 = vmatprep.subr.bf16.mxu0 %v651
    %889 = vmatpush1.bf16.msra.mxu0 %v650
    %890 = vmatprep.subr.bf16.mxu0 %v655
    %891 = vmatpush1.bf16.msra.mxu0 %v654
    %892 = vmatprep.subr.bf16.mxu0 %v659
    %893 = vmatpush1.bf16.msra.mxu0 %v658
    %894 = vmatprep.subr.bf16.mxu0 %v663
    %895 = vmatpush1.bf16.msra.mxu0 %v662
    %896 = vmatprep.subr.bf16.mxu0 %v667
    %897 = vmatpush1.bf16.msra.mxu0 %v666
    %898 = vmatprep.subr.bf16.mxu0 %v671
    %899 = vmatpush1.bf16.msra.mxu0 %v670
    %900 = vmatprep.subr.bf16.mxu0 %v675
    %901 = vmatpush1.bf16.msra.mxu0 %v674
    %902 = vmatprep.mubr.bf16.mxu0 %v77
    %903 = vmatmul.mubr.bf16.gmra.mrb[0].mxu0 %v76
    %v904 = vpop.f32.mrb[0].mxu0
    %v905 = vadd.f32 %v213, %v904
    %v906 = vpop.f32.mrb[0].mxu0
    %v907 = vadd.f32 %v217, %v906
    %v908 = vpop.f32.mrb[0].mxu0
    %v909 = vpop.f32.mrb[0].mxu0
    %910 = vdwg.mxu0
    %911 = vmatprep.subr.bf16.mxu0 %v679
    %912 = vmatpush1.bf16.msra.mxu0 %v678
    %913 = vmatprep.subr.bf16.mxu0 %v683
    %914 = vmatpush1.bf16.msra.mxu0 %v682
    %915 = vmatprep.subr.bf16.mxu0 %v687
    %916 = vmatpush1.bf16.msra.mxu0 %v686
    %917 = vmatprep.subr.bf16.mxu0 %v691
    %918 = vmatpush1.bf16.msra.mxu0 %v690
    %919 = vmatprep.subr.bf16.mxu0 %v695
    %920 = vmatpush1.bf16.msra.mxu0 %v694
    %921 = vmatprep.subr.bf16.mxu0 %v699
    %922 = vmatpush1.bf16.msra.mxu0 %v698
    %923 = vmatprep.subr.bf16.mxu0 %v703
    %924 = vmatpush1.bf16.msra.mxu0 %v702
    %925 = vmatprep.subr.bf16.mxu0 %v707
    %926 = vmatpush1.bf16.msra.mxu0 %v706
    %927 = vmatprep.subr.bf16.mxu0 %v711
    %928 = vmatpush1.bf16.msra.mxu0 %v710
    %929 = vmatprep.subr.bf16.mxu0 %v715
    %930 = vmatpush1.bf16.msra.mxu0 %v714
    %931 = vmatprep.subr.bf16.mxu0 %v719
    %932 = vmatpush1.bf16.msra.mxu0 %v718
    %933 = vmatprep.subr.bf16.mxu0 %v723
    %934 = vmatpush1.bf16.msra.mxu0 %v722
    %935 = vmatprep.subr.bf16.mxu0 %v727
    %936 = vmatpush1.bf16.msra.mxu0 %v726
    %937 = vmatprep.subr.bf16.mxu0 %v731
    %938 = vmatpush1.bf16.msra.mxu0 %v730
    %939 = vmatprep.subr.bf16.mxu0 %v735
    %940 = vmatpush1.bf16.msra.mxu0 %v734
    %941 = vmatprep.subr.bf16.mxu0 %v739
    %942 = vmatpush1.bf16.msra.mxu0 %v738
    %943 = vmatprep.mubr.bf16.mxu0 %v79
    %944 = vmatmul.mubr.bf16.gmra.mrb[0].mxu0 %v78
    %v945 = vpop.f32.mrb[0].mxu0
    %v946 = vadd.f32 %v905, %v945
    %v947 = vpop.f32.mrb[0].mxu0
    %v948 = vadd.f32 %v907, %v947
    %v949 = vpop.f32.mrb[0].mxu0
    %v950 = vpop.f32.mrb[0].mxu0
    %951 = vdwg.mxu0
    %952 = vmatprep.subr.bf16.mxu0 %v617
    %953 = vmatpush1.bf16.msra.mxu0 %v616
    %954 = vmatprep.subr.bf16.mxu0 %v621
    %955 = vmatpush1.bf16.msra.mxu0 %v620
    %956 = vmatprep.subr.bf16.mxu0 %v625
    %957 = vmatpush1.bf16.msra.mxu0 %v624
    %958 = vmatprep.subr.bf16.mxu0 %v629
    %959 = vmatpush1.bf16.msra.mxu0 %v628
    %960 = vmatprep.subr.bf16.mxu0 %v633
    %961 = vmatpush1.bf16.msra.mxu0 %v632
    %962 = vmatprep.subr.bf16.mxu0 %v637
    %963 = vmatpush1.bf16.msra.mxu0 %v636
    %964 = vmatprep.subr.bf16.mxu0 %v641
    %965 = vmatpush1.bf16.msra.mxu0 %v640
    %966 = vmatprep.subr.bf16.mxu0 %v645
    %967 = vmatpush1.bf16.msra.mxu0 %v644
    %968 = vmatprep.subr.bf16.mxu0 %v649
    %969 = vmatpush1.bf16.msra.mxu0 %v648
    %970 = vmatprep.subr.bf16.mxu0 %v653
    %971 = vmatpush1.bf16.msra.mxu0 %v652
    %972 = vmatprep.subr.bf16.mxu0 %v657
    %973 = vmatpush1.bf16.msra.mxu0 %v656
    %974 = vmatprep.subr.bf16.mxu0 %v661
    %975 = vmatpush1.bf16.msra.mxu0 %v660
    %976 = vmatprep.subr.bf16.mxu0 %v665
    %977 = vmatpush1.bf16.msra.mxu0 %v664
    %978 = vmatprep.subr.bf16.mxu0 %v669
    %979 = vmatpush1.bf16.msra.mxu0 %v668
    %980 = vmatprep.subr.bf16.mxu0 %v673
    %981 = vmatpush1.bf16.msra.mxu0 %v672
    %982 = vmatprep.subr.bf16.mxu0 %v677
    %983 = vmatpush1.bf16.msra.mxu0 %v676
    %984 = vmatprep.mubr.bf16.mxu0 %v77
    %985 = vmatmul.mubr.bf16.gmra.mrb[0].mxu0 %v76
    %v986 = vpop.f32.mrb[0].mxu0
    %v987 = vadd.f32 %v221, %v986
    %v988 = vpop.f32.mrb[0].mxu0
    %v989 = vadd.f32 %v225, %v988
    %v990 = vpop.f32.mrb[0].mxu0
    %v991 = vpop.f32.mrb[0].mxu0
    %992 = vdwg.mxu0
    %993 = vmatprep.subr.bf16.mxu0 %v681
    %994 = vmatpush1.bf16.msra.mxu0 %v680
    %995 = vmatprep.subr.bf16.mxu0 %v685
    %996 = vmatpush1.bf16.msra.mxu0 %v684
    %997 = vmatprep.subr.bf16.mxu0 %v689
    %998 = vmatpush1.bf16.msra.mxu0 %v688
    %999 = vmatprep.subr.bf16.mxu0 %v693
    %1000 = vmatpush1.bf16.msra.mxu0 %v692
    %1001 = vmatprep.subr.bf16.mxu0 %v697
    %1002 = vmatpush1.bf16.msra.mxu0 %v696
    %1003 = vmatprep.subr.bf16.mxu0 %v701
    %1004 = vmatpush1.bf16.msra.mxu0 %v700
    %1005 = vmatprep.subr.bf16.mxu0 %v705
    %1006 = vmatpush1.bf16.msra.mxu0 %v704
    %1007 = vmatprep.subr.bf16.mxu0 %v709
    %1008 = vmatpush1.bf16.msra.mxu0 %v708
    %1009 = vmatprep.subr.bf16.mxu0 %v713
    %1010 = vmatpush1.bf16.msra.mxu0 %v712
    %1011 = vmatprep.subr.bf16.mxu0 %v717
    %1012 = vmatpush1.bf16.msra.mxu0 %v716
    %1013 = vmatprep.subr.bf16.mxu0 %v721
    %1014 = vmatpush1.bf16.msra.mxu0 %v720
    %1015 = vmatprep.subr.bf16.mxu0 %v725
    %1016 = vmatpush1.bf16.msra.mxu0 %v724
    %1017 = vmatprep.subr.bf16.mxu0 %v729
    %1018 = vmatpush1.bf16.msra.mxu0 %v728
    %1019 = vmatprep.subr.bf16.mxu0 %v733
    %1020 = vmatpush1.bf16.msra.mxu0 %v732
    %1021 = vmatprep.subr.bf16.mxu0 %v737
    %1022 = vmatpush1.bf16.msra.mxu0 %v736
    %1023 = vmatprep.subr.bf16.mxu0 %v741
    %1024 = vmatpush1.bf16.msra.mxu0 %v740
    %1025 = vmatprep.mubr.bf16.mxu0 %v79
    %1026 = vmatmul.mubr.bf16.gmra.mrb[0].mxu0 %v78
    %v1027 = vpop.f32.mrb[0].mxu0
    %v1028 = vadd.f32 %v987, %v1027
    %v1029 = vpop.f32.mrb[0].mxu0
    %v1030 = vadd.f32 %v989, %v1029
    %v1031 = vpop.f32.mrb[0].mxu0
    %v1032 = vpop.f32.mrb[0].mxu0
    %1033 = vdwg.mxu0
    %v1034 = vmax.f32 %v946, 0.0
    %v1035 = vmax.f32 %v948, 0.0
    %v1036 = vmax.f32 %v1028, 0.0
    %v1037 = vmax.f32 %v1030, 0.0
    %v1038 = vpack.c.bf16 %v1034, %v1034
    %v1039 = vpack.c.bf16 %v1035, %v1035
    %v1040 = vpack.c.bf16 %v1036, %v1036
    %v1041 = vpack.c.bf16 %v1037, %v1037
    %v1042 = vld [vmem:[#allocation5] sm:$0xff]
    %v1043 = vld [vmem:[#allocation5 + $0x8] sm:$0xff]
    %v1044 = vld [vmem:[#allocation5 + $0x10] sm:$0xff]
    %v1045 = vld [vmem:[#allocation5 + $0x18] sm:$0xff]
    %v1046 = vld [vmem:[#allocation5 + $0x20] sm:$0xff]
    %v1047 = vld [vmem:[#allocation5 + $0x28] sm:$0xff]
    %v1048 = vld [vmem:[#allocation5 + $0x30] sm:$0xff]
    %v1049 = vld [vmem:[#allocation5 + $0x38] sm:$0xff]
    %v1050 = vld [vmem:[#allocation5 + $0x40] sm:$0xff]
    %v1051 = vld [vmem:[#allocation5 + $0x48] sm:$0xff]
    %v1052 = vld [vmem:[#allocation5 + $0x50] sm:$0xff]
    %v1053 = vld [vmem:[#allocation5 + $0x58] sm:$0xff]
    %v1054 = vld [vmem:[#allocation5 + $0x60] sm:$0xff]
    %v1055 = vld [vmem:[#allocation5 + $0x68] sm:$0xff]
    %v1056 = vld [vmem:[#allocation5 + $0x70] sm:$0xff]
    %v1057 = vld [vmem:[#allocation5 + $0x78] sm:$0xff]
    %v1058 = vld [vmem:[#allocation5 + $0x80] sm:$0xff]
    %v1059 = vld [vmem:[#allocation5 + $0x88] sm:$0xff]
    %v1060 = vld [vmem:[#allocation5 + $0x90] sm:$0xff]
    %v1061 = vld [vmem:[#allocation5 + $0x98] sm:$0xff]
    %v1062 = vld [vmem:[#allocation5 + $0xa0] sm:$0xff]
    %v1063 = vld [vmem:[#allocation5 + $0xa8] sm:$0xff]
    %v1064 = vld [vmem:[#allocation5 + $0xb0] sm:$0xff]
    %v1065 = vld [vmem:[#allocation5 + $0xb8] sm:$0xff]
    %v1066 = vld [vmem:[#allocation5 + $0xc0] sm:$0xff]
    %v1067 = vld [vmem:[#allocation5 + $0xc8] sm:$0xff]
    %v1068 = vld [vmem:[#allocation5 + $0xd0] sm:$0xff]
    %v1069 = vld [vmem:[#allocation5 + $0xd8] sm:$0xff]
    %v1070 = vld [vmem:[#allocation5 + $0xe0] sm:$0xff]
    %v1071 = vld [vmem:[#allocation5 + $0xe8] sm:$0xff]
    %v1072 = vld [vmem:[#allocation5 + $0xf0] sm:$0xff]
    %v1073 = vld [vmem:[#allocation5 + $0xf8] sm:$0xff]
    %v1074 = vld [vmem:[#allocation5 + $0x100] sm:$0xff]
    %v1075 = vld [vmem:[#allocation5 + $0x108] sm:$0xff]
    %v1076 = vld [vmem:[#allocation5 + $0x110] sm:$0xff]
    %v1077 = vld [vmem:[#allocation5 + $0x118] sm:$0xff]
    %v1078 = vld [vmem:[#allocation5 + $0x120] sm:$0xff]
    %v1079 = vld [vmem:[#allocation5 + $0x128] sm:$0xff]
    %v1080 = vld [vmem:[#allocation5 + $0x130] sm:$0xff]
    %v1081 = vld [vmem:[#allocation5 + $0x138] sm:$0xff]
    %v1082 = vld [vmem:[#allocation5 + $0x140] sm:$0xff]
    %v1083 = vld [vmem:[#allocation5 + $0x148] sm:$0xff]
    %v1084 = vld [vmem:[#allocation5 + $0x150] sm:$0xff]
    %v1085 = vld [vmem:[#allocation5 + $0x158] sm:$0xff]
    %v1086 = vld [vmem:[#allocation5 + $0x160] sm:$0xff]
    %v1087 = vld [vmem:[#allocation5 + $0x168] sm:$0xff]
    %v1088 = vld [vmem:[#allocation5 + $0x170] sm:$0xff]
    %v1089 = vld [vmem:[#allocation5 + $0x178] sm:$0xff]
    %v1090 = vld [vmem:[#allocation5 + $0x180] sm:$0xff]
    %v1091 = vld [vmem:[#allocation5 + $0x188] sm:$0xff]
    %v1092 = vld [vmem:[#allocation5 + $0x190] sm:$0xff]
    %v1093 = vld [vmem:[#allocation5 + $0x198] sm:$0xff]
    %v1094 = vld [vmem:[#allocation5 + $0x1a0] sm:$0xff]
    %v1095 = vld [vmem:[#allocation5 + $0x1a8] sm:$0xff]
    %v1096 = vld [vmem:[#allocation5 + $0x1b0] sm:$0xff]
    %v1097 = vld [vmem:[#allocation5 + $0x1b8] sm:$0xff]
    %v1098 = vld [vmem:[#allocation5 + $0x1c0] sm:$0xff]
    %v1099 = vld [vmem:[#allocation5 + $0x1c8] sm:$0xff]
    %v1100 = vld [vmem:[#allocation5 + $0x1d0] sm:$0xff]
    %v1101 = vld [vmem:[#allocation5 + $0x1d8] sm:$0xff]
    %v1102 = vld [vmem:[#allocation5 + $0x1e0] sm:$0xff]
    %v1103 = vld [vmem:[#allocation5 + $0x1e8] sm:$0xff]
    %v1104 = vld [vmem:[#allocation5 + $0x1f0] sm:$0xff]
    %v1105 = vld [vmem:[#allocation5 + $0x1f8] sm:$0xff]
    %v1106 = vld [vmem:[%s5 + $0x4] sm:$0x3]
    %v1108 = vlaneseq
    %v1109 = vshrl.u32 %v1108, 7
    %v1110 = vsub.s32 0, %v1109
    %v1111 = vrot.slane %v1106, %v1110
    %v1112 = vlaneseq
    %v1113 = vshrl.u32 %v1112, 7
    %v1114 = vsub.s32 1, %v1113
    %v1115 = vrot.slane %v1106, %v1114
    %v1182 = vunpack.c.l.b16 %v1042
    %v1183 = vunpack.c.h.b16 %v1042
    %v1184 = vunpack.c.l.b16 %v1043
    %v1185 = vunpack.c.h.b16 %v1043
    %v1186 = vunpack.c.l.b16 %v1044
    %v1187 = vunpack.c.h.b16 %v1044
    %v1188 = vunpack.c.l.b16 %v1045
    %v1189 = vunpack.c.h.b16 %v1045
    %v1190 = vunpack.c.l.b16 %v1046
    %v1191 = vunpack.c.h.b16 %v1046
    %v1192 = vunpack.c.l.b16 %v1047
    %v1193 = vunpack.c.h.b16 %v1047
    %v1194 = vunpack.c.l.b16 %v1048
    %v1195 = vunpack.c.h.b16 %v1048
    %v1196 = vunpack.c.l.b16 %v1049
    %v1197 = vunpack.c.h.b16 %v1049
    %v1198 = vunpack.c.l.b16 %v1050
    %v1199 = vunpack.c.h.b16 %v1050
    %v1200 = vunpack.c.l.b16 %v1051
    %v1201 = vunpack.c.h.b16 %v1051
    %v1202 = vunpack.c.l.b16 %v1052
    %v1203 = vunpack.c.h.b16 %v1052
    %v1204 = vunpack.c.l.b16 %v1053
    %v1205 = vunpack.c.h.b16 %v1053
    %v1206 = vunpack.c.l.b16 %v1054
    %v1207 = vunpack.c.h.b16 %v1054
    %v1208 = vunpack.c.l.b16 %v1055
    %v1209 = vunpack.c.h.b16 %v1055
    %v1210 = vunpack.c.l.b16 %v1056
    %v1211 = vunpack.c.h.b16 %v1056
    %v1212 = vunpack.c.l.b16 %v1057
    %v1213 = vunpack.c.h.b16 %v1057
    %v1214 = vunpack.c.l.b16 %v1058
    %v1215 = vunpack.c.h.b16 %v1058
    %v1216 = vunpack.c.l.b16 %v1059
    %v1217 = vunpack.c.h.b16 %v1059
    %v1218 = vunpack.c.l.b16 %v1060
    %v1219 = vunpack.c.h.b16 %v1060
    %v1220 = vunpack.c.l.b16 %v1061
    %v1221 = vunpack.c.h.b16 %v1061
    %v1222 = vunpack.c.l.b16 %v1062
    %v1223 = vunpack.c.h.b16 %v1062
    %v1224 = vunpack.c.l.b16 %v1063
    %v1225 = vunpack.c.h.b16 %v1063
    %v1226 = vunpack.c.l.b16 %v1064
    %v1227 = vunpack.c.h.b16 %v1064
    %v1228 = vunpack.c.l.b16 %v1065
    %v1229 = vunpack.c.h.b16 %v1065
    %v1230 = vunpack.c.l.b16 %v1066
    %v1231 = vunpack.c.h.b16 %v1066
    %v1232 = vunpack.c.l.b16 %v1067
    %v1233 = vunpack.c.h.b16 %v1067
    %v1234 = vunpack.c.l.b16 %v1068
    %v1235 = vunpack.c.h.b16 %v1068
    %v1236 = vunpack.c.l.b16 %v1069
    %v1237 = vunpack.c.h.b16 %v1069
    %v1238 = vunpack.c.l.b16 %v1070
    %v1239 = vunpack.c.h.b16 %v1070
    %v1240 = vunpack.c.l.b16 %v1071
    %v1241 = vunpack.c.h.b16 %v1071
    %v1242 = vunpack.c.l.b16 %v1072
    %v1243 = vunpack.c.h.b16 %v1072
    %v1244 = vunpack.c.l.b16 %v1073
    %v1245 = vunpack.c.h.b16 %v1073
    %v1246 = vunpack.c.l.b16 %v1074
    %v1247 = vunpack.c.h.b16 %v1074
    %v1248 = vunpack.c.l.b16 %v1075
    %v1249 = vunpack.c.h.b16 %v1075
    %v1250 = vunpack.c.l.b16 %v1076
    %v1251 = vunpack.c.h.b16 %v1076
    %v1252 = vunpack.c.l.b16 %v1077
    %v1253 = vunpack.c.h.b16 %v1077
    %v1254 = vunpack.c.l.b16 %v1078
    %v1255 = vunpack.c.h.b16 %v1078
    %v1256 = vunpack.c.l.b16 %v1079
    %v1257 = vunpack.c.h.b16 %v1079
    %v1258 = vunpack.c.l.b16 %v1080
    %v1259 = vunpack.c.h.b16 %v1080
    %v1260 = vunpack.c.l.b16 %v1081
    %v1261 = vunpack.c.h.b16 %v1081
    %v1262 = vunpack.c.l.b16 %v1082
    %v1263 = vunpack.c.h.b16 %v1082
    %v1264 = vunpack.c.l.b16 %v1083
    %v1265 = vunpack.c.h.b16 %v1083
    %v1266 = vunpack.c.l.b16 %v1084
    %v1267 = vunpack.c.h.b16 %v1084
    %v1268 = vunpack.c.l.b16 %v1085
    %v1269 = vunpack.c.h.b16 %v1085
    %v1270 = vunpack.c.l.b16 %v1086
    %v1271 = vunpack.c.h.b16 %v1086
    %v1272 = vunpack.c.l.b16 %v1087
    %v1273 = vunpack.c.h.b16 %v1087
    %v1274 = vunpack.c.l.b16 %v1088
    %v1275 = vunpack.c.h.b16 %v1088
    %v1276 = vunpack.c.l.b16 %v1089
    %v1277 = vunpack.c.h.b16 %v1089
    %v1278 = vunpack.c.l.b16 %v1090
    %v1279 = vunpack.c.h.b16 %v1090
    %v1280 = vunpack.c.l.b16 %v1091
    %v1281 = vunpack.c.h.b16 %v1091
    %v1282 = vunpack.c.l.b16 %v1092
    %v1283 = vunpack.c.h.b16 %v1092
    %v1284 = vunpack.c.l.b16 %v1093
    %v1285 = vunpack.c.h.b16 %v1093
    %v1286 = vunpack.c.l.b16 %v1094
    %v1287 = vunpack.c.h.b16 %v1094
    %v1288 = vunpack.c.l.b16 %v1095
    %v1289 = vunpack.c.h.b16 %v1095
    %v1290 = vunpack.c.l.b16 %v1096
    %v1291 = vunpack.c.h.b16 %v1096
    %v1292 = vunpack.c.l.b16 %v1097
    %v1293 = vunpack.c.h.b16 %v1097
    %v1294 = vunpack.c.l.b16 %v1098
    %v1295 = vunpack.c.h.b16 %v1098
    %v1296 = vunpack.c.l.b16 %v1099
    %v1297 = vunpack.c.h.b16 %v1099
    %v1298 = vunpack.c.l.b16 %v1100
    %v1299 = vunpack.c.h.b16 %v1100
    %v1300 = vunpack.c.l.b16 %v1101
    %v1301 = vunpack.c.h.b16 %v1101
    %v1302 = vunpack.c.l.b16 %v1102
    %v1303 = vunpack.c.h.b16 %v1102
    %v1304 = vunpack.c.l.b16 %v1103
    %v1305 = vunpack.c.h.b16 %v1103
    %v1306 = vunpack.c.l.b16 %v1104
    %v1307 = vunpack.c.h.b16 %v1104
    %v1308 = vunpack.c.l.b16 %v1105
    %v1309 = vunpack.c.h.b16 %v1105
    %v1310 = vpack.c.b16 %v1184, %v1182
    %v1311 = vpack.c.b16 %v1185, %v1183
    %v1312 = vpack.c.b16 %v1188, %v1186
    %v1313 = vpack.c.b16 %v1189, %v1187
    %v1314 = vpack.c.b16 %v1192, %v1190
    %v1315 = vpack.c.b16 %v1193, %v1191
    %v1316 = vpack.c.b16 %v1196, %v1194
    %v1317 = vpack.c.b16 %v1197, %v1195
    %v1318 = vpack.c.b16 %v1200, %v1198
    %v1319 = vpack.c.b16 %v1201, %v1199
    %v1320 = vpack.c.b16 %v1204, %v1202
    %v1321 = vpack.c.b16 %v1205, %v1203
    %v1322 = vpack.c.b16 %v1208, %v1206
    %v1323 = vpack.c.b16 %v1209, %v1207
    %v1324 = vpack.c.b16 %v1212, %v1210
    %v1325 = vpack.c.b16 %v1213, %v1211
    %v1326 = vpack.c.b16 %v1216, %v1214
    %v1327 = vpack.c.b16 %v1217, %v1215
    %v1328 = vpack.c.b16 %v1220, %v1218
    %v1329 = vpack.c.b16 %v1221, %v1219
    %v1330 = vpack.c.b16 %v1224, %v1222
    %v1331 = vpack.c.b16 %v1225, %v1223
    %v1332 = vpack.c.b16 %v1228, %v1226
    %v1333 = vpack.c.b16 %v1229, %v1227
    %v1334 = vpack.c.b16 %v1232, %v1230
    %v1335 = vpack.c.b16 %v1233, %v1231
    %v1336 = vpack.c.b16 %v1236, %v1234
    %v1337 = vpack.c.b16 %v1237, %v1235
    %v1338 = vpack.c.b16 %v1240, %v1238
    %v1339 = vpack.c.b16 %v1241, %v1239
    %v1340 = vpack.c.b16 %v1244, %v1242
    %v1341 = vpack.c.b16 %v1245, %v1243
    %v1342 = vpack.c.b16 %v1248, %v1246
    %v1343 = vpack.c.b16 %v1249, %v1247
    %v1344 = vpack.c.b16 %v1252, %v1250
    %v1345 = vpack.c.b16 %v1253, %v1251
    %v1346 = vpack.c.b16 %v1256, %v1254
    %v1347 = vpack.c.b16 %v1257, %v1255
    %v1348 = vpack.c.b16 %v1260, %v1258
    %v1349 = vpack.c.b16 %v1261, %v1259
    %v1350 = vpack.c.b16 %v1264, %v1262
    %v1351 = vpack.c.b16 %v1265, %v1263
    %v1352 = vpack.c.b16 %v1268, %v1266
    %v1353 = vpack.c.b16 %v1269, %v1267
    %v1354 = vpack.c.b16 %v1272, %v1270
    %v1355 = vpack.c.b16 %v1273, %v1271
    %v1356 = vpack.c.b16 %v1276, %v1274
    %v1357 = vpack.c.b16 %v1277, %v1275
    %v1358 = vpack.c.b16 %v1280, %v1278
    %v1359 = vpack.c.b16 %v1281, %v1279
    %v1360 = vpack.c.b16 %v1284, %v1282
    %v1361 = vpack.c.b16 %v1285, %v1283
    %v1362 = vpack.c.b16 %v1288, %v1286
    %v1363 = vpack.c.b16 %v1289, %v1287
    %v1364 = vpack.c.b16 %v1292, %v1290
    %v1365 = vpack.c.b16 %v1293, %v1291
    %v1366 = vpack.c.b16 %v1296, %v1294
    %v1367 = vpack.c.b16 %v1297, %v1295
    %v1368 = vpack.c.b16 %v1300, %v1298
    %v1369 = vpack.c.b16 %v1301, %v1299
    %v1370 = vpack.c.b16 %v1304, %v1302
    %v1371 = vpack.c.b16 %v1305, %v1303
    %v1372 = vpack.c.b16 %v1308, %v1306
    %v1373 = vpack.c.b16 %v1309, %v1307
    %1438 = vmatprep.subr.bf16.mxu0 %v1311
    %1439 = vmatpush1.bf16.msra.mxu0 %v1310
    %1440 = vmatprep.subr.bf16.mxu0 %v1313
    %1441 = vmatpush1.bf16.msra.mxu0 %v1312
    %1442 = vmatprep.subr.bf16.mxu0 %v1315
    %1443 = vmatpush1.bf16.msra.mxu0 %v1314
    %1444 = vmatprep.subr.bf16.mxu0 %v1317
    %1445 = vmatpush1.bf16.msra.mxu0 %v1316
    %1446 = vmatprep.subr.bf16.mxu0 %v1319
    %1447 = vmatpush1.bf16.msra.mxu0 %v1318
    %1448 = vmatprep.subr.bf16.mxu0 %v1321
    %1449 = vmatpush1.bf16.msra.mxu0 %v1320
    %1450 = vmatprep.subr.bf16.mxu0 %v1323
    %1451 = vmatpush1.bf16.msra.mxu0 %v1322
    %1452 = vmatprep.subr.bf16.mxu0 %v1325
    %1453 = vmatpush1.bf16.msra.mxu0 %v1324
    %1454 = vmatprep.subr.bf16.mxu0 %v1327
    %1455 = vmatpush1.bf16.msra.mxu0 %v1326
    %1456 = vmatprep.subr.bf16.mxu0 %v1329
    %1457 = vmatpush1.bf16.msra.mxu0 %v1328
    %1458 = vmatprep.subr.bf16.mxu0 %v1331
    %1459 = vmatpush1.bf16.msra.mxu0 %v1330
    %1460 = vmatprep.subr.bf16.mxu0 %v1333
    %1461 = vmatpush1.bf16.msra.mxu0 %v1332
    %1462 = vmatprep.subr.bf16.mxu0 %v1335
    %1463 = vmatpush1.bf16.msra.mxu0 %v1334
    %1464 = vmatprep.subr.bf16.mxu0 %v1337
    %1465 = vmatpush1.bf16.msra.mxu0 %v1336
    %1466 = vmatprep.subr.bf16.mxu0 %v1339
    %1467 = vmatpush1.bf16.msra.mxu0 %v1338
    %1468 = vmatprep.subr.bf16.mxu0 %v1341
    %1469 = vmatpush1.bf16.msra.mxu0 %v1340
    %1470 = vmatprep.mubr.bf16.mxu0 %v1039
    %1471 = vmatmul.mubr.bf16.gmra.mrb[0].mxu0 %v1038
    %v1472 = vpop.f32.mrb[0].mxu0
    %v1473 = vadd.f32 %v1111, %v1472
    %v1474 = vpop.f32.mrb[0].mxu0
    %v1475 = vadd.f32 %v1115, %v1474
    %v1476 = vpop.f32.mrb[0].mxu0
    %v1477 = vpop.f32.mrb[0].mxu0
    %1478 = vdwg.mxu0
    %1479 = vmatprep.subr.bf16.mxu0 %v1343
    %1480 = vmatpush1.bf16.msra.mxu0 %v1342
    %1481 = vmatprep.subr.bf16.mxu0 %v1345
    %1482 = vmatpush1.bf16.msra.mxu0 %v1344
    %1483 = vmatprep.subr.bf16.mxu0 %v1347
    %1484 = vmatpush1.bf16.msra.mxu0 %v1346
    %1485 = vmatprep.subr.bf16.mxu0 %v1349
    %1486 = vmatpush1.bf16.msra.mxu0 %v1348
    %1487 = vmatprep.subr.bf16.mxu0 %v1351
    %1488 = vmatpush1.bf16.msra.mxu0 %v1350
    %1489 = vmatprep.subr.bf16.mxu0 %v1353
    %1490 = vmatpush1.bf16.msra.mxu0 %v1352
    %1491 = vmatprep.subr.bf16.mxu0 %v1355
    %1492 = vmatpush1.bf16.msra.mxu0 %v1354
    %1493 = vmatprep.subr.bf16.mxu0 %v1357
    %1494 = vmatpush1.bf16.msra.mxu0 %v1356
    %1495 = vmatprep.subr.bf16.mxu0 %v1359
    %1496 = vmatpush1.bf16.msra.mxu0 %v1358
    %1497 = vmatprep.subr.bf16.mxu0 %v1361
    %1498 = vmatpush1.bf16.msra.mxu0 %v1360
    %1499 = vmatprep.subr.bf16.mxu0 %v1363
    %1500 = vmatpush1.bf16.msra.mxu0 %v1362
    %1501 = vmatprep.subr.bf16.mxu0 %v1365
    %1502 = vmatpush1.bf16.msra.mxu0 %v1364
    %1503 = vmatprep.subr.bf16.mxu0 %v1367
    %1504 = vmatpush1.bf16.msra.mxu0 %v1366
    %1505 = vmatprep.subr.bf16.mxu0 %v1369
    %1506 = vmatpush1.bf16.msra.mxu0 %v1368
    %1507 = vmatprep.subr.bf16.mxu0 %v1371
    %1508 = vmatpush1.bf16.msra.mxu0 %v1370
    %1509 = vmatprep.subr.bf16.mxu0 %v1373
    %1510 = vmatpush1.bf16.msra.mxu0 %v1372
    %1511 = vmatprep.mubr.bf16.mxu0 %v1041
    %1512 = vmatmul.mubr.bf16.gmra.mrb[0].mxu0 %v1040
    %v1513 = vpop.f32.mrb[0].mxu0
    %v1514 = vadd.f32 %v1473, %v1513
    %v1515 = vpop.f32.mrb[0].mxu0
    %v1516 = vadd.f32 %v1475, %v1515
    %v1517 = vpop.f32.mrb[0].mxu0
    %v1518 = vpop.f32.mrb[0].mxu0
    %1519 = vdwg.mxu0
    %v1520 = vmax.f32 %v1514, 0.0
    %v1521 = vmax.f32 %v1516, 0.0
    %v1522 = vpack.c.bf16 %v1520, %v1520
    %v1523 = vpack.c.bf16 %v1521, %v1521
    %v1524 = vld [vmem:[%s3] sm:$0xf]
    %v1525 = vld [vmem:[%s3 + $0x4] sm:$0xf]
    %v1526 = vld [vmem:[%s3 + $0x8] sm:$0xf]
    %v1527 = vld [vmem:[%s3 + $0xc] sm:$0xf]
    %v1528 = vld [vmem:[%s3 + $0x10] sm:$0xf]
    %v1529 = vld [vmem:[%s3 + $0x14] sm:$0xf]
    %v1530 = vld [vmem:[%s3 + $0x18] sm:$0xf]
    %v1531 = vld [vmem:[%s3 + $0x1c] sm:$0xf]
    %v1532 = vld [vmem:[%s3 + $0x20] sm:$0xf]
    %v1533 = vld [vmem:[%s3 + $0x24] sm:$0xf]
    %v1534 = vld [vmem:[%s3 + $0x28] sm:$0xf]
    %v1535 = vld [vmem:[%s3 + $0x2c] sm:$0xf]
    %v1536 = vld [vmem:[%s3 + $0x30] sm:$0xf]
    %v1537 = vld [vmem:[%s3 + $0x34] sm:$0xf]
    %v1538 = vld [vmem:[%s3 + $0x38] sm:$0xf]
    %v1539 = vld [vmem:[%s3 + $0x3c] sm:$0xf]
    %v1540 = vld [vmem:[%s3 + $0x40] sm:$0xf]
    %v1541 = vld [vmem:[%s3 + $0x44] sm:$0xf]
    %v1542 = vld [vmem:[%s3 + $0x48] sm:$0xf]
    %v1543 = vld [vmem:[%s3 + $0x4c] sm:$0xf]
    %v1544 = vld [vmem:[%s3 + $0x50] sm:$0xf]
    %v1545 = vld [vmem:[%s3 + $0x54] sm:$0xf]
    %v1546 = vld [vmem:[%s3 + $0x58] sm:$0xf]
    %v1547 = vld [vmem:[%s3 + $0x5c] sm:$0xf]
    %v1548 = vld [vmem:[%s3 + $0x60] sm:$0xf]
    %v1549 = vld [vmem:[%s3 + $0x64] sm:$0xf]
    %v1550 = vld [vmem:[%s3 + $0x68] sm:$0xf]
    %v1551 = vld [vmem:[%s3 + $0x6c] sm:$0xf]
    %v1552 = vld [vmem:[%s3 + $0x70] sm:$0xf]
    %v1553 = vld [vmem:[%s3 + $0x74] sm:$0xf]
    %v1554 = vld [vmem:[%s3 + $0x78] sm:$0xf]
    %v1555 = vld [vmem:[%s3 + $0x7c] sm:$0xf]
    %v1556 = vld [vmem:[%s5 + $0x6] sm:$0x1]
    %v1558 = vlaneseq
    %v1559 = vshrl.u32 %v1558, 7
    %v1560 = vsub.s32 0, %v1559
    %v1561 = vrot.slane %v1556, %v1560
    %v1595 = vunpack.c.l.b16 %v1524
    %v1596 = vunpack.c.l.b16 %v1525
    %v1597 = vunpack.c.l.b16 %v1526
    %v1598 = vunpack.c.l.b16 %v1527
    %v1599 = vunpack.c.l.b16 %v1528
    %v1600 = vunpack.c.l.b16 %v1529
    %v1601 = vunpack.c.l.b16 %v1530
    %v1602 = vunpack.c.l.b16 %v1531
    %v1603 = vunpack.c.l.b16 %v1532
    %v1604 = vunpack.c.l.b16 %v1533
    %v1605 = vunpack.c.l.b16 %v1534
    %v1606 = vunpack.c.l.b16 %v1535
    %v1607 = vunpack.c.l.b16 %v1536
    %v1608 = vunpack.c.l.b16 %v1537
    %v1609 = vunpack.c.l.b16 %v1538
    %v1610 = vunpack.c.l.b16 %v1539
    %v1611 = vunpack.c.l.b16 %v1540
    %v1612 = vunpack.c.l.b16 %v1541
    %v1613 = vunpack.c.l.b16 %v1542
    %v1614 = vunpack.c.l.b16 %v1543
    %v1615 = vunpack.c.l.b16 %v1544
    %v1616 = vunpack.c.l.b16 %v1545
    %v1617 = vunpack.c.l.b16 %v1546
    %v1618 = vunpack.c.l.b16 %v1547
    %v1619 = vunpack.c.l.b16 %v1548
    %v1620 = vunpack.c.l.b16 %v1549
    %v1621 = vunpack.c.l.b16 %v1550
    %v1622 = vunpack.c.l.b16 %v1551
    %v1623 = vunpack.c.l.b16 %v1552
    %v1624 = vunpack.c.l.b16 %v1553
    %v1625 = vunpack.c.l.b16 %v1554
    %v1626 = vunpack.c.l.b16 %v1555
    %v1627 = vpack.c.b16 %v1596, %v1595
    %v1628 = vpack.c.b16 %v1598, %v1597
    %v1629 = vpack.c.b16 %v1600, %v1599
    %v1630 = vpack.c.b16 %v1602, %v1601
    %v1631 = vpack.c.b16 %v1604, %v1603
    %v1632 = vpack.c.b16 %v1606, %v1605
    %v1633 = vpack.c.b16 %v1608, %v1607
    %v1634 = vpack.c.b16 %v1610, %v1609
    %v1635 = vpack.c.b16 %v1612, %v1611
    %v1636 = vpack.c.b16 %v1614, %v1613
    %v1637 = vpack.c.b16 %v1616, %v1615
    %v1638 = vpack.c.b16 %v1618, %v1617
    %v1639 = vpack.c.b16 %v1620, %v1619
    %v1640 = vpack.c.b16 %v1622, %v1621
    %v1641 = vpack.c.b16 %v1624, %v1623
    %v1642 = vpack.c.b16 %v1626, %v1625
    %1659 = vmatprep.subr.bf16.mxu0 0
    %1660 = vmatpush1.bf16.msra.mxu0 %v1627
    %1661 = vmatprep.subr.bf16.mxu0 0
    %1662 = vmatpush1.bf16.msra.mxu0 %v1628
    %1663 = vmatprep.subr.bf16.mxu0 0
    %1664 = vmatpush1.bf16.msra.mxu0 %v1629
    %1665 = vmatprep.subr.bf16.mxu0 0
    %1666 = vmatpush1.bf16.msra.mxu0 %v1630
    %1667 = vmatprep.subr.bf16.mxu0 0
    %1668 = vmatpush1.bf16.msra.mxu0 %v1631
    %1669 = vmatprep.subr.bf16.mxu0 0
    %1670 = vmatpush1.bf16.msra.mxu0 %v1632
    %1671 = vmatprep.subr.bf16.mxu0 0
    %1672 = vmatpush1.bf16.msra.mxu0 %v1633
    %1673 = vmatprep.subr.bf16.mxu0 0
    %1674 = vmatpush1.bf16.msra.mxu0 %v1634
    %1675 = vmatprep.subr.bf16.mxu0 0
    %1676 = vmatpush1.bf16.msra.mxu0 %v1635
    %1677 = vmatprep.subr.bf16.mxu0 0
    %1678 = vmatpush1.bf16.msra.mxu0 %v1636
    %1679 = vmatprep.subr.bf16.mxu0 0
    %1680 = vmatpush1.bf16.msra.mxu0 %v1637
    %1681 = vmatprep.subr.bf16.mxu0 0
    %1682 = vmatpush1.bf16.msra.mxu0 %v1638
    %1683 = vmatprep.subr.bf16.mxu0 0
    %1684 = vmatpush1.bf16.msra.mxu0 %v1639
    %1685 = vmatprep.subr.bf16.mxu0 0
    %1686 = vmatpush1.bf16.msra.mxu0 %v1640
    %1687 = vmatprep.subr.bf16.mxu0 0
    %1688 = vmatpush1.bf16.msra.mxu0 %v1641
    %1689 = vmatprep.subr.bf16.mxu0 0
    %1690 = vmatpush1.bf16.msra.mxu0 %v1642
    %1691 = vmatprep.mubr.bf16.mxu0 %v1523
    %1692 = vmatmul.mubr.bf16.gmra.mrb[0].mxu0 %v1522
    %v1693 = vpop.f32.mrb[0].mxu0
    %v1694 = vadd.f32 %v1561, %v1693
    %v1695 = vpop.f32.mrb[0].mxu0
    %v1696 = vpop.f32.mrb[0].mxu0
    %v1697 = vpop.f32.mrb[0].mxu0
    %1698 = vdwg.mxu0
    %v1699 = vmax.f32 %v1694, 0.0
    %v1700 = vpack.c.bf16 %v1699, %v1699
    %v1701 = vld [vmem:[%s4] sm:$0xf]
    %v1702 = vld [vmem:[%s4 + $0x4] sm:$0xf]
    %v1703 = vld [vmem:[%s4 + $0x8] sm:$0xf]
    %v1704 = vld [vmem:[%s4 + $0xc] sm:$0xf]
    %v1705 = vld [vmem:[%s5 + $0x7] sm:$0x1]
    %v1707 = vlaneseq
    %v1708 = vshrl.u32 %v1707, 7
    %v1709 = vsub.s32 0, %v1708
    %v1710 = vrot.slane %v1705, %v1709
    %v1716 = vunpack.c.l.b16 %v1701
    %v1717 = vunpack.c.l.b16 %v1702
    %v1718 = vunpack.c.l.b16 %v1703
    %v1719 = vunpack.c.l.b16 %v1704
    %v1720 = vpack.c.b16 %v1717, %v1716
    %v1721 = vpack.c.b16 %v1719, %v1718
    %vm1724 = vcmask 261120
    %v1726 = vsel %vm1724, %v1700, 0
    %1728 = vmatprep.subr.bf16.mxu0 0
    %1729 = vmatpush1.bf16.msra.mxu0 %v1720
    %1730 = vmatprep.subr.bf16.mxu0 0
    %1731 = vmatpush1.bf16.msra.mxu0 %v1721
    %1732 = vmatprep.subr.bf16.mxu0 0
    %1733 = vmatpush1.bf16.msra.mxu0 0
    %1734 = vmatprep.subr.bf16.mxu0 0
    %1735 = vmatpush1.bf16.msra.mxu0 0
    %1736 = vmatprep.subr.bf16.mxu0 0
    %1737 = vmatpush1.bf16.msra.mxu0 0
    %1738 = vmatprep.subr.bf16.mxu0 0
    %1739 = vmatpush1.bf16.msra.mxu0 0
    %1740 = vmatprep.subr.bf16.mxu0 0
    %1741 = vmatpush1.bf16.msra.mxu0 0
    %1742 = vmatprep.subr.bf16.mxu0 0
    %1743 = vmatpush1.bf16.msra.mxu0 0
    %1744 = vmatprep.subr.bf16.mxu0 0
    %1745 = vmatpush1.bf16.msra.mxu0 0
    %1746 = vmatprep.subr.bf16.mxu0 0
    %1747 = vmatpush1.bf16.msra.mxu0 0
    %1748 = vmatprep.subr.bf16.mxu0 0
    %1749 = vmatpush1.bf16.msra.mxu0 0
    %1750 = vmatprep.subr.bf16.mxu0 0
    %1751 = vmatpush1.bf16.msra.mxu0 0
    %1752 = vmatprep.subr.bf16.mxu0 0
    %1753 = vmatpush1.bf16.msra.mxu0 0
    %1754 = vmatprep.subr.bf16.mxu0 0
    %1755 = vmatpush1.bf16.msra.mxu0 0
    %1756 = vmatprep.subr.bf16.mxu0 0
    %1757 = vmatpush1.bf16.msra.mxu0 0
    %1758 = vmatprep.subr.bf16.mxu0 0
    %1759 = vmatpush1.bf16.msra.mxu0 0
    %1760 = vmatprep.mubr.bf16.mxu0 0
    %1761 = vmatmul.mubr.bf16.gmra.mrb[0].mxu0 %v1726
    %v1762 = vpop.f32.mrb[0].mxu0
    %v1763 = vadd.f32 %v1710, %v1762
    %v1764 = vpop.f32.mrb[0].mxu0
    %v1765 = vpop.f32.mrb[0].mxu0
    %v1766 = vpop.f32.mrb[0].mxu0
    %1767 = vdwg.mxu0
    %vm1768 = vcmask 1041408
    %v1769 = vsel %vm1768, %v1763, -inf
    %1770 = vmax.xlane.f32.xlu0 %v1769
    %v1771 = vpop.xlane.xlu0 %1770
    %v1772 = vsub.f32 %v1763, %v1771
    %v1773 = vmul.f32 %v1772, 1.442695
    %v1774 = vpow.pop %v1773
    %v1775 = vsel %vm1768, %v1774, 0.0
    %1776 = vadd.xlane.f32.xlu0 %v1775
    %v1777 = vpop.xlane.xlu0 %1776
    %v1778 = vrcp.pop %v1777
    %v1779 = vmul.f32 %v1774, %v1778
    %1780 = vst [vmem:[#allocation7] sm:$0x3] %v1779
    // Predicated region
    $region34: #{tpu_custom_call.1} parent=1 // pred_check
      _
    $region35: #{tpu_custom_call.1} parent=1 // pred_check_branch
      %1782 = sbr.rel (0) target = $region37
    $region36: #{tpu_custom_call.1} parent=1 // pred_region
      %s1784 = ssub.s32 32, 32
      %1785 = vsyncadd [#allocation4], %s1784
      %s1787 = sshll.u32 [#allocation7], 4
      %s1788 = int_to_ptr.vmem [resolvable:$true] %s1787
      %1790 = dma.vmem_to_hbm [thread:$0]  %s1788, 32, %s6, [#allocation4]
    $region37: #{tpu_custom_call.1} parent=1 // pred_fallthru
      _
    // Predicated region
    $region38: #{tpu_custom_call.1} parent=1 // pred_check
      _
    $region39: #{tpu_custom_call.1} parent=1 // pred_check_branch
      %1792 = sbr.rel (0) target = $region41
    $region40: #{tpu_custom_call.1} parent=1 // pred_region
      %1793 = dma.done [#allocation4], 32
    $region41: #{tpu_custom_call.1} parent=1 // pred_fallthru
      _
    %1794 = vsyncpa [#allocation3], 1
    %1795 = vsyncpa [#allocation6], 1
    %1796 = vsyncpa [#allocation4], 1

</llo_original>
